<compile_context>
chip_gen: v5e
topology: v5e:2x2
jax: 0.10.0
libtpu: 0.0.40
codegen_flags: <defaults>
</compile_context>

<pallas_src>
import functools
import math

import jax
import jax.numpy as jnp
from jax import lax
from jax.experimental import pallas as pl
from jax.experimental.pallas import tpu as pltpu

_INV_SQRT2 = 1.0 / math.sqrt(2.0)
_GN_EPS = 1e-5          # torch.nn.GroupNorm default eps
_FRONT = 8              # sublane-aligned start row of each sample's activations


def _round_up(x, m):
    return ((x + m - 1) // m) * m


def _encoder_kernel(x_ref, w_ref, b_ref, g_ref, bt_ref, o_ref,
                    act_ref, col_ref, *,
                    seq_lens, kernel_size, stride, padding, b_blk, l_buf):
    """Fused forward for B_blk samples of the whole conv_encoder_tueg stack.

    x_ref  : (B_blk, L0, C_in)            raw input samples (channels-last)
    w_ref  : (n_layers, K*C_act, C_out)   per-tap weights packed at C_act pitch
    b_ref  : (n_layers, 1, C_out)         conv bias
    g_ref  : (n_layers, 1, C_out)         GroupNorm gamma
    bt_ref : (n_layers, 1, C_out)         GroupNorm beta
    o_ref  : (B_blk, L_final, C_out)      output samples
    act_ref: (B_blk*l_buf, C_act) f32     per-sample padded activations (pitch l_buf)
    col_ref: (B_blk*Lp_max, K*C_act) f32  im2col slab, samples stacked along MXU M
    """
    n_layers = w_ref.shape[0]
    K = kernel_size
    c_act = act_ref.shape[1]
    c_in0 = x_ref.shape[2]
    c_out = o_ref.shape[2]
    L0 = seq_lens[0]
    mm_dtype = w_ref.dtype                 # bf16 MXU operands by default

    # One-time zero fill: these zeros serve as the conv's zero padding (left pad
    # row at _FRONT - padding, right-pad tail rows) and zero the unused input
    # lanes [c_in0, c_act).  Never repeated per layer (see partial re-zero below).
    act_ref[...] = jnp.zeros_like(act_ref)

    # Stage the B_blk input samples into the padded activation buffer at the
    # sublane-aligned offset _FRONT within each sample's pitch region.
    for b in range(b_blk):
        base = b * l_buf + _FRONT
        act_ref[base:base + L0, :c_in0] = x_ref[b].astype(jnp.float32)

    for l in range(n_layers):               # static unroll: n_layers is tiny
        L_out = seq_lens[l + 1]
        Lp = _round_up(L_out, 8)            # per-sample row pitch inside col_ref
        M = b_blk * Lp

        # ---- Conv1d(k=K, stride, padding) as ONE batched im2col matmul -------
        # Per-sample strided sublane gathers pack the K taps contiguously at
        # C_act granularity (contraction depth K*C_act, no 128-lane zero pad);
        # all B_blk samples are stacked along the MXU M dimension.
        for b in range(b_blk):
            src = b * l_buf + (_FRONT - padding)
            dst = b * Lp
            for k in range(K):
                col_ref[dst:dst + L_out, k * c_act:(k + 1) * c_act] = (
                    act_ref[pl.ds(src + k, L_out, stride=stride), :])
        y = jnp.dot(col_ref[:M, :].astype(mm_dtype), w_ref[l],
                    preferred_element_type=jnp.float32)       # (M, C_out) f32

        bias = b_ref[l]
        gamma = g_ref[l]
        beta = bt_ref[l]

        # Rows the NEXT layer may legally read as right zero-padding but which
        # now hold stale data from this (longer) layer's input: 0-2 rows only.
        if l < n_layers - 1:
            L_next = seq_lens[l + 2]
            need_max_row = (_FRONT - padding) + (K - 1) + (L_next - 1) * stride
            n_zero = max(0, need_max_row + 1 - (_FRONT + L_out))
        else:
            n_zero = 0

        inv_cnt = 1.0 / float(L_out * c_out)
        for b in range(b_blk):
            yb = y[b * Lp:b * Lp + L_out, :] + bias    # drop Lp-padding rows

            # ---- Dropout1d: identity at inference.
            # TODO(synk): training-mode Dropout1d (random channel zeroing) not implemented.

            # ---- GroupNorm(num_groups=1, C): stats over ALL (L_out, C) of this
            # sample, single sum / sum-of-squares pass, all in f32.
            mean = jnp.sum(yb) * inv_cnt
            var = jnp.maximum(jnp.sum(yb * yb) * inv_cnt - mean * mean, 0.0)
            yb = (yb - mean) * lax.rsqrt(var + _GN_EPS)
            yb = yb * gamma + beta

            # ---- exact (erf-based) GELU, matching torch.nn.GELU() default
            yb = 0.5 * yb * (1.0 + lax.erf(yb * _INV_SQRT2))

            if l == n_layers - 1:
                o_ref[b] = yb.astype(o_ref.dtype)
            else:
                # Stage as the next layer's input (stays in VMEM); aligned store.
                base = b * l_buf + _FRONT
                act_ref[base:base + L_out, :c_out] = yb
                if n_zero > 0:
                    act_ref[base + L_out:base + L_out + n_zero, :] = (
                        jnp.zeros((n_zero, c_act), jnp.float32))


def _pack_params(params, *, kernel_size, c_act, matmul_dtype):
    """Stack per-layer params; weights packed per tap at C_act granularity:
    W_all[l, k*c_act + ci, co] = W_l[k, ci, co] (zero rows for ci >= C_in_l)."""
    n_layers = len(params)
    c_out = params[0]["W"].shape[2]
    W_all = jnp.zeros((n_layers, kernel_size * c_act, c_out), jnp.float32)
    b_all = jnp.zeros((n_layers, 1, c_out), jnp.float32)
    g_all = jnp.zeros((n_layers, 1, c_out), jnp.float32)
    bt_all = jnp.zeros((n_layers, 1, c_out), jnp.float32)
    for l, p in enumerate(params):
        Wl = p["W"]                        # (K, C_in_l, C_out)
        cin_l = Wl.shape[1]
        for k in range(kernel_size):
            W_all = W_all.at[l, k * c_act:k * c_act + cin_l, :].set(Wl[k])
        b_all = b_all.at[l].set(p["b"].reshape(1, c_out))
        g_all = g_all.at[l].set(p["gamma"].reshape(1, c_out))
        bt_all = bt_all.at[l].set(p["beta"].reshape(1, c_out))
    # Pre-cast weights in the wrapper (halves the weight DMA and removes the
    # per-layer in-kernel cast); GN/GELU params stay f32.
    return W_all.astype(matmul_dtype), b_all, g_all, bt_all


def _pick_batch_block(n, cap=16):
    """Largest divisor of n that is <= cap: samples processed per grid step."""
    for d in range(min(n, cap), 0, -1):
        if n % d == 0:
            return d
    return 1


def conv_encoder_tueg_forward(x_ncl, params, *, kernel_size=3, stride=2,
                              padding=1, matmul_dtype=jnp.bfloat16,
                              batch_block=None):
    """Full encoder forward.  x_ncl: (N, C_in, L) -> (N, C_emb, L_final).

    matmul_dtype=jnp.bfloat16 (default) uses MXU-native bf16 operands with f32
    accumulation; pass jnp.float32 for a high-precision path.
    """
    N, C_in, L0 = x_ncl.shape
    n_layers = len(params)
    K = kernel_size
    C_out = params[0]["W"].shape[2]
    C_act = max(C_in, C_out)
    assert padding <= _FRONT, "front pad must cover the conv's left zero padding"

    B_blk = _pick_batch_block(N) if batch_block is None else batch_block
    assert N % B_blk == 0, "batch_block must divide the batch size"

    # Per-layer output lengths (PyTorch Conv1d formula) + window-bound asserts.
    seq_lens = [L0]
    for _ in range(n_layers):
        L_in = seq_lens[-1]
        L_nxt = (L_in + 2 * padding - K) // stride + 1
        assert L_nxt >= 1, "sequence collapsed to zero length"
        assert (K - 1) + (L_nxt - 1) * stride <= L_in + 2 * padding - 1, (
            "conv taps would read outside the zero-padded window")
        seq_lens.append(L_nxt)
    L_final = seq_lens[-1]

    W_all, b_all, g_all, bt_all = _pack_params(
        params, kernel_size=K, c_act=C_act, matmul_dtype=matmul_dtype)

    # Per-sample activation pitch: content at [_FRONT, _FRONT + L_in) plus the
    # deepest tap row any layer can read; a multiple of 8 keeps every
    # per-sample store offset sublane aligned.
    need_rows = _FRONT + L0
    for l in range(n_layers):
        L_out = seq_lens[l + 1]
        need_rows = max(need_rows,
                        (_FRONT - padding) + (K - 1) + (L_out - 1) * stride + 1)
    L_buf = _round_up(need_rows, 8)
    Lp_max = _round_up(seq_lens[1], 8)       # layer 0 has the largest L_out

    x_nlc = jnp.transpose(x_ncl, (0, 2, 1))  # NCL -> NLC (channels on lanes)

    kernel = functools.partial(
        _encoder_kernel, seq_lens=tuple(seq_lens), kernel_size=K,
        stride=stride, padding=padding, b_blk=B_blk, l_buf=L_buf)

    # VMEM use per grid step is tiny (tens of KB) at these sizes; for very long
    # TUEG windows, tile L with an extra grid axis + two-pass GroupNorm and
    # budget tiles against v7x's 64 MiB VMEM (set vmem_limit_bytes explicitly).
    out_nlc = pl.pallas_call(
        kernel,
        out_shape=jax.ShapeDtypeStruct((N, L_final, C_out), x_ncl.dtype),
        grid=(N // B_blk,),
        in_specs=[
            pl.BlockSpec((B_blk, L0, C_in), lambda n: (n, 0, 0)),
            pl.BlockSpec((n_layers, K * C_act, C_out), lambda n: (0, 0, 0)),
            pl.BlockSpec((n_layers, 1, C_out), lambda n: (0, 0, 0)),
            pl.BlockSpec((n_layers, 1, C_out), lambda n: (0, 0, 0)),
            pl.BlockSpec((n_layers, 1, C_out), lambda n: (0, 0, 0)),
        ],
        out_specs=pl.BlockSpec((B_blk, L_final, C_out), lambda n: (n, 0, 0)),
        scratch_shapes=[
            pltpu.VMEM((B_blk * L_buf, C_act), jnp.float32),
            pltpu.VMEM((B_blk * Lp_max, K * C_act), jnp.float32),
        ],
        # Batch-block axis is "parallel" for megacore sharding; on v7x verify in
        # the trace that both TensorCores are active (switch to CORE_PARALLEL /
        # core_map if one core idles).
        compiler_params=pltpu.CompilerParams(dimension_semantics=("parallel",)),
    )(x_nlc, W_all, b_all, g_all, bt_all)

    return jnp.transpose(out_nlc, (0, 2, 1))  # NLC -> NCL (PyTorch layout)


def init_params(key, *, n_layers=4, input_channels=19, embedding_size=32,
                kernel_size=3):
    """Deterministic parameter init mirroring the PyTorch module's shapes/defaults."""
    params = []
    c_in = input_channels
    for _ in range(n_layers):
        key, k_w, k_b = jax.random.split(key, 3)
        fan_in = c_in * kernel_size
        bound = 1.0 / math.sqrt(fan_in)   # PyTorch Conv1d default U(-bound, bound)
        W = jax.random.uniform(k_w, (kernel_size, c_in, embedding_size),
                               jnp.float32, -bound, bound)
        b = jax.random.uniform(k_b, (1, embedding_size),
                               jnp.float32, -bound, bound)
        gamma = jnp.ones((1, embedding_size), jnp.float32)   # GroupNorm default weight
        beta = jnp.zeros((1, embedding_size), jnp.float32)   # GroupNorm default bias
        params.append(dict(W=W, b=b, gamma=gamma, beta=beta))
        c_in = embedding_size
    return params


def _reference_forward(x_ncl, params, *, stride=2, padding=1):
    """Pure-JAX reference of the PyTorch module (for a numerical sanity check)."""
    x = x_ncl
    for p in params:
        w_oik = jnp.transpose(p["W"], (2, 1, 0))      # (C_out, C_in, K)
        x = lax.conv_general_dilated(
            x, w_oik, window_strides=(stride,), padding=[(padding, padding)],
            dimension_numbers=("NCH", "OIH", "NCH"),
            precision=lax.Precision.HIGHEST)
        x = x + p["b"].reshape(1, -1, 1)
        mean = jnp.mean(x, axis=(1, 2), keepdims=True)
        var = jnp.mean(jnp.square(x - mean), axis=(1, 2), keepdims=True)
        x = (x - mean) * lax.rsqrt(var + _GN_EPS)
        x = x * p["gamma"].reshape(1, -1, 1) + p["beta"].reshape(1, -1, 1)
        x = 0.5 * x * (1.0 + lax.erf(x * _INV_SQRT2))
    return x


if __name__ == "__main__":
    key = jax.random.PRNGKey(0)
    k_x, k_p = jax.random.split(key)

    # Small shapes consistent with the module: batch=2, EEG channels=19,
    # seq len=64, embedding_size=32, n_layers=4 (length: 64->32->16->8->4).
    N, C_IN, L = 2, 19, 64
    EMB, N_LAYERS = 32, 4

    x = jax.random.normal(k_x, (N, C_IN, L), jnp.float32)
    params = init_params(k_p, n_layers=N_LAYERS, input_channels=C_IN,
                         embedding_size=EMB, kernel_size=3)

    ref = _reference_forward(x, params)

    # Default path: bf16 MXU operands, f32 accumulation / GN / GELU.
    fwd = jax.jit(conv_encoder_tueg_forward)
    out = jax.block_until_ready(fwd(x, params))
    assert out.shape == (N, EMB, L // (2 ** N_LAYERS)), out.shape
    assert out.dtype == jnp.float32
    err_bf16 = float(jnp.max(jnp.abs(out - ref)))
    assert err_bf16 < 1e-1, f"bf16 kernel/reference mismatch: max abs err {err_bf16}"

    # High-precision path: f32 MXU operands, tight tolerance vs the reference.
    fwd_f32 = jax.jit(functools.partial(conv_encoder_tueg_forward,
                                        matmul_dtype=jnp.float32))
    out_f32 = jax.block_until_ready(fwd_f32(x, params))
    err_f32 = float(jnp.max(jnp.abs(out_f32 - ref)))
    assert err_f32 < 2e-3, f"f32 kernel/reference mismatch: max abs err {err_f32}"

    print("KERNEL_OK")
</pallas_src>

<mosaic_0001>
module attributes {stable_mosaic.version = 11 : i64} {
  func.func @_encoder_kernel(%arg0: i32, %arg1: memref<2x64x19xf32, #tpu.memory_space<vmem>>, %arg2: memref<4x96x32xbf16, #tpu.memory_space<vmem>>, %arg3: memref<4x1x32xf32, #tpu.memory_space<vmem>>, %arg4: memref<4x1x32xf32, #tpu.memory_space<vmem>>, %arg5: memref<4x1x32xf32, #tpu.memory_space<vmem>>, %arg6: memref<2x4x32xf32, #tpu.memory_space<vmem>>, %arg7: memref<144x32xf32, #tpu.memory_space<vmem>>, %arg8: memref<64x96xf32, #tpu.memory_space<vmem>>) attributes {dimension_semantics = [#tpu.dimension_semantics<parallel>], iteration_bounds = array<i64: 1>, scalar_prefetch = 0 : i64, scratch_operands = 2 : i64, tpu.core_type = #tpu.core_type<tc>, window_params = [{transform_indices = @transform_0, window_bounds = array<i64: 2, 64, 19>}, {pipeline_mode = #tpu.pipeline_mode<synchronous>, transform_indices = @transform_1, window_bounds = array<i64: 4, 96, 32>}, {pipeline_mode = #tpu.pipeline_mode<synchronous>, transform_indices = @transform_2, window_bounds = array<i64: 4, 1, 32>}, {pipeline_mode = #tpu.pipeline_mode<synchronous>, transform_indices = @transform_3, window_bounds = array<i64: 4, 1, 32>}, {pipeline_mode = #tpu.pipeline_mode<synchronous>, transform_indices = @transform_4, window_bounds = array<i64: 4, 1, 32>}, {transform_indices = @transform_5, window_bounds = array<i64: 2, 4, 32>}]} {
    %cst = arith.constant 0.000000e+00 : f32
    %0 = vector.broadcast %cst : f32 to vector<144x32xf32>
    %c0 = arith.constant 0 : index
    %c0_0 = arith.constant 0 : index
    %1 = vector.load %arg7[%c0, %c0_0] : memref<144x32xf32, #tpu.memory_space<vmem>>, vector<144x32xf32>
    tpu.vector_store %arg7[%c0, %c0_0], %0 {strides = array<i32>} : memref<144x32xf32, #tpu.memory_space<vmem>>, vector<144x32xf32>,
    %c0_1 = arith.constant 0 : index
    %c0_2 = arith.constant 0 : index
    %c0_3 = arith.constant 0 : index
    %2 = vector.load %arg1[%c0_1, %c0_2, %c0_3] : memref<2x64x19xf32, #tpu.memory_space<vmem>>, vector<1x64x19xf32>
    %3 = vector.shape_cast %2 : vector<1x64x19xf32> to vector<64x19xf32>
    %c8 = arith.constant 8 : index
    %c0_4 = arith.constant 0 : index
    %4 = vector.load %arg7[%c8, %c0_4] : memref<144x32xf32, #tpu.memory_space<vmem>>, vector<64x19xf32>
    tpu.vector_store %arg7[%c8, %c0_4], %3 {strides = array<i32>} : memref<144x32xf32, #tpu.memory_space<vmem>>, vector<64x19xf32>,
    %c1 = arith.constant 1 : index
    %c0_5 = arith.constant 0 : index
    %c0_6 = arith.constant 0 : index
    %5 = vector.load %arg1[%c1, %c0_5, %c0_6] : memref<2x64x19xf32, #tpu.memory_space<vmem>>, vector<1x64x19xf32>
    %6 = vector.shape_cast %5 : vector<1x64x19xf32> to vector<64x19xf32>
    %c80 = arith.constant 80 : index
    %c0_7 = arith.constant 0 : index
    %7 = vector.load %arg7[%c80, %c0_7] : memref<144x32xf32, #tpu.memory_space<vmem>>, vector<64x19xf32>
    tpu.vector_store %arg7[%c80, %c0_7], %6 {strides = array<i32>} : memref<144x32xf32, #tpu.memory_space<vmem>>, vector<64x19xf32>,
    %c7 = arith.constant 7 : index
    %c0_8 = arith.constant 0 : index
    %8 = tpu.strided_load %arg7[%c7, %c0_8] {strides = array<i32: 2, 1>} : memref<144x32xf32, #tpu.memory_space<vmem>>, vector<32x32xf32>
    %c0_9 = arith.constant 0 : index
    %c0_10 = arith.constant 0 : index
    %9 = vector.load %arg8[%c0_9, %c0_10] : memref<64x96xf32, #tpu.memory_space<vmem>>, vector<32x32xf32>
    tpu.vector_store %arg8[%c0_9, %c0_10], %8 {strides = array<i32>} : memref<64x96xf32, #tpu.memory_space<vmem>>, vector<32x32xf32>,
    %c8_11 = arith.constant 8 : index
    %c0_12 = arith.constant 0 : index
    %10 = tpu.strided_load %arg7[%c8_11, %c0_12] {strides = array<i32: 2, 1>} : memref<144x32xf32, #tpu.memory_space<vmem>>, vector<32x32xf32>
    %c0_13 = arith.constant 0 : index
    %c32 = arith.constant 32 : index
    %11 = vector.load %arg8[%c0_13, %c32] : memref<64x96xf32, #tpu.memory_space<vmem>>, vector<32x32xf32>
    tpu.vector_store %arg8[%c0_13, %c32], %10 {strides = array<i32>} : memref<64x96xf32, #tpu.memory_space<vmem>>, vector<32x32xf32>,
    %c9 = arith.constant 9 : index
    %c0_14 = arith.constant 0 : index
    %12 = tpu.strided_load %arg7[%c9, %c0_14] {strides = array<i32: 2, 1>} : memref<144x32xf32, #tpu.memory_space<vmem>>, vector<32x32xf32>
    %c0_15 = arith.constant 0 : index
    %c64 = arith.constant 64 : index
    %13 = vector.load %arg8[%c0_15, %c64] : memref<64x96xf32, #tpu.memory_space<vmem>>, vector<32x32xf32>
    tpu.vector_store %arg8[%c0_15, %c64], %12 {strides = array<i32>} : memref<64x96xf32, #tpu.memory_space<vmem>>, vector<32x32xf32>,
    %c79 = arith.constant 79 : index
    %c0_16 = arith.constant 0 : index
    %14 = tpu.strided_load %arg7[%c79, %c0_16] {strides = array<i32: 2, 1>} : memref<144x32xf32, #tpu.memory_space<vmem>>, vector<32x32xf32>
    %c32_17 = arith.constant 32 : index
    %c0_18 = arith.constant 0 : index
    %15 = vector.load %arg8[%c32_17, %c0_18] : memref<64x96xf32, #tpu.memory_space<vmem>>, vector<32x32xf32>
    tpu.vector_store %arg8[%c32_17, %c0_18], %14 {strides = array<i32>} : memref<64x96xf32, #tpu.memory_space<vmem>>, vector<32x32xf32>,
    %c80_19 = arith.constant 80 : index
    %c0_20 = arith.constant 0 : index
    %16 = tpu.strided_load %arg7[%c80_19, %c0_20] {strides = array<i32: 2, 1>} : memref<144x32xf32, #tpu.memory_space<vmem>>, vector<32x32xf32>
    %c32_21 = arith.constant 32 : index
    %c32_22 = arith.constant 32 : index
    %17 = vector.load %arg8[%c32_21, %c32_22] : memref<64x96xf32, #tpu.memory_space<vmem>>, vector<32x32xf32>
    tpu.vector_store %arg8[%c32_21, %c32_22], %16 {strides = array<i32>} : memref<64x96xf32, #tpu.memory_space<vmem>>, vector<32x32xf32>,
    %c81 = arith.constant 81 : index
    %c0_23 = arith.constant 0 : index
    %18 = tpu.strided_load %arg7[%c81, %c0_23] {strides = array<i32: 2, 1>} : memref<144x32xf32, #tpu.memory_space<vmem>>, vector<32x32xf32>
    %c32_24 = arith.constant 32 : index
    %c64_25 = arith.constant 64 : index
    %19 = vector.load %arg8[%c32_24, %c64_25] : memref<64x96xf32, #tpu.memory_space<vmem>>, vector<32x32xf32>
    tpu.vector_store %arg8[%c32_24, %c64_25], %18 {strides = array<i32>} : memref<64x96xf32, #tpu.memory_space<vmem>>, vector<32x32xf32>,
    %c0_26 = arith.constant 0 : index
    %c0_27 = arith.constant 0 : index
    %20 = vector.load %arg8[%c0_26, %c0_27] : memref<64x96xf32, #tpu.memory_space<vmem>>, vector<64x96xf32>
    %21 = arith.truncf %20 : vector<64x96xf32> to vector<64x96xbf16>
    %c0_28 = arith.constant 0 : index
    %c0_29 = arith.constant 0 : index
    %c0_30 = arith.constant 0 : index
    %22 = vector.load %arg2[%c0_28, %c0_29, %c0_30] : memref<4x96x32xbf16, #tpu.memory_space<vmem>>, vector<1x96x32xbf16>
    %23 = vector.shape_cast %22 : vector<1x96x32xbf16> to vector<96x32xbf16>
    %cst_31 = arith.constant dense<0.000000e+00> : vector<64x32xf32>
    %24 = tpu.matmul %21, %23, %cst_31 {dimension_numbers = #tpu.dot_dimension_numbers<[1], [0], [0], [1], [0, 0, 1, 1], [], []>} : vector<64x96xbf16>, vector<96x32xbf16>, vector<64x32xf32> -> vector<64x32xf32>
    %c0_32 = arith.constant 0 : index
    %c0_33 = arith.constant 0 : index
    %c0_34 = arith.constant 0 : index
    %25 = vector.load %arg3[%c0_32, %c0_33, %c0_34] : memref<4x1x32xf32, #tpu.memory_space<vmem>>, vector<1x1x32xf32>
    %26 = vector.shape_cast %25 : vector<1x1x32xf32> to vector<1x32xf32>
    %c0_35 = arith.constant 0 : index
    %c0_36 = arith.constant 0 : index
    %c0_37 = arith.constant 0 : index
    %27 = vector.load %arg4[%c0_35, %c0_36, %c0_37] : memref<4x1x32xf32, #tpu.memory_space<vmem>>, vector<1x1x32xf32>
    %28 = vector.shape_cast %27 : vector<1x1x32xf32> to vector<1x32xf32>
    %c0_38 = arith.constant 0 : index
    %c0_39 = arith.constant 0 : index
    %c0_40 = arith.constant 0 : index
    %29 = vector.load %arg5[%c0_38, %c0_39, %c0_40] : memref<4x1x32xf32, #tpu.memory_space<vmem>>, vector<1x1x32xf32>
    %30 = vector.shape_cast %29 : vector<1x1x32xf32> to vector<1x32xf32>
    %31 = vector.extract_strided_slice %24 {offsets = [0, 0], sizes = [32, 32], strides = [1, 1]} : vector<64x32xf32> to vector<32x32xf32>
    %32 = vector.broadcast %26 : vector<1x32xf32> to vector<32x32xf32>
    %33 = arith.addf %31, %32 : vector<32x32xf32>
    %34 = vector.shape_cast %33 : vector<32x32xf32> to vector<1x32x32xf32>
    %cst_41 = arith.constant dense<0.000000e+00> : vector<1xf32>
    %35 = vector.multi_reduction <add>, %34, %cst_41 [1, 2] : vector<1x32x32xf32> to vector<1xf32>
    %36 = vector.shape_cast %35 : vector<1xf32> to vector<1x1x1xf32>
    %37 = vector.extract %36[0, 0, 0] : f32 from vector<1x1x1xf32>
    %cst_42 = arith.constant 9.765625E-4 : f32
    %38 = arith.mulf %37, %cst_42 : f32
    %39 = arith.mulf %33, %33 : vector<32x32xf32>
    %40 = vector.shape_cast %39 : vector<32x32xf32> to vector<1x32x32xf32>
    %cst_43 = arith.constant dense<0.000000e+00> : vector<1xf32>
    %41 = vector.multi_reduction <add>, %40, %cst_43 [1, 2] : vector<1x32x32xf32> to vector<1xf32>
    %42 = vector.shape_cast %41 : vector<1xf32> to vector<1x1x1xf32>
    %43 = vector.extract %42[0, 0, 0] : f32 from vector<1x1x1xf32>
    %cst_44 = arith.constant 9.765625E-4 : f32
    %44 = arith.mulf %43, %cst_44 : f32
    %45 = arith.mulf %38, %38 : f32
    %46 = arith.subf %44, %45 : f32
    %cst_45 = arith.constant 0.000000e+00 : f32
    %47 = arith.maximumf %46, %cst_45 : f32
    %48 = vector.broadcast %38 : f32 to vector<32x32xf32>
    %49 = arith.subf %33, %48 : vector<32x32xf32>
    %cst_46 = arith.constant 9.99999974E-6 : f32
    %50 = arith.addf %47, %cst_46 : f32
    %51 = math.rsqrt %50 : f32
    %52 = vector.broadcast %51 : f32 to vector<32x32xf32>
    %53 = arith.mulf %49, %52 : vector<32x32xf32>
    %54 = vector.broadcast %28 : vector<1x32xf32> to vector<32x32xf32>
    %55 = arith.mulf %53, %54 : vector<32x32xf32>
    %56 = vector.broadcast %30 : vector<1x32xf32> to vector<32x32xf32>
    %57 = arith.addf %55, %56 : vector<32x32xf32>
    %cst_47 = arith.constant 5.000000e-01 : f32
    %58 = vector.broadcast %cst_47 : f32 to vector<32x32xf32>
    %59 = arith.mulf %58, %57 : vector<32x32xf32>
    %cst_48 = arith.constant 0.707106769 : f32
    %60 = vector.broadcast %cst_48 : f32 to vector<32x32xf32>
    %61 = arith.mulf %57, %60 : vector<32x32xf32>
    %62 = math.erf %61 : vector<32x32xf32>
    %cst_49 = arith.constant 1.000000e+00 : f32
    %63 = vector.broadcast %cst_49 : f32 to vector<32x32xf32>
    %64 = arith.addf %63, %62 : vector<32x32xf32>
    %65 = arith.mulf %59, %64 : vector<32x32xf32>
    %c8_50 = arith.constant 8 : index
    %c0_51 = arith.constant 0 : index
    %66 = vector.load %arg7[%c8_50, %c0_51] : memref<144x32xf32, #tpu.memory_space<vmem>>, vector<32x32xf32>
    tpu.vector_store %arg7[%c8_50, %c0_51], %65 {strides = array<i32>} : memref<144x32xf32, #tpu.memory_space<vmem>>, vector<32x32xf32>,
    %67 = vector.extract_strided_slice %24 {offsets = [32, 0], sizes = [32, 32], strides = [1, 1]} : vector<64x32xf32> to vector<32x32xf32>
    %68 = vector.broadcast %26 : vector<1x32xf32> to vector<32x32xf32>
    %69 = arith.addf %67, %68 : vector<32x32xf32>
    %70 = vector.shape_cast %69 : vector<32x32xf32> to vector<1x32x32xf32>
    %cst_52 = arith.constant dense<0.000000e+00> : vector<1xf32>
    %71 = vector.multi_reduction <add>, %70, %cst_52 [1, 2] : vector<1x32x32xf32> to vector<1xf32>
    %72 = vector.shape_cast %71 : vector<1xf32> to vector<1x1x1xf32>
    %73 = vector.extract %72[0, 0, 0] : f32 from vector<1x1x1xf32>
    %cst_53 = arith.constant 9.765625E-4 : f32
    %74 = arith.mulf %73, %cst_53 : f32
    %75 = arith.mulf %69, %69 : vector<32x32xf32>
    %76 = vector.shape_cast %75 : vector<32x32xf32> to vector<1x32x32xf32>
    %cst_54 = arith.constant dense<0.000000e+00> : vector<1xf32>
    %77 = vector.multi_reduction <add>, %76, %cst_54 [1, 2] : vector<1x32x32xf32> to vector<1xf32>
    %78 = vector.shape_cast %77 : vector<1xf32> to vector<1x1x1xf32>
    %79 = vector.extract %78[0, 0, 0] : f32 from vector<1x1x1xf32>
    %cst_55 = arith.constant 9.765625E-4 : f32
    %80 = arith.mulf %79, %cst_55 : f32
    %81 = arith.mulf %74, %74 : f32
    %82 = arith.subf %80, %81 : f32
    %cst_56 = arith.constant 0.000000e+00 : f32
    %83 = arith.maximumf %82, %cst_56 : f32
    %84 = vector.broadcast %74 : f32 to vector<32x32xf32>
    %85 = arith.subf %69, %84 : vector<32x32xf32>
    %cst_57 = arith.constant 9.99999974E-6 : f32
    %86 = arith.addf %83, %cst_57 : f32
    %87 = math.rsqrt %86 : f32
    %88 = vector.broadcast %87 : f32 to vector<32x32xf32>
    %89 = arith.mulf %85, %88 : vector<32x32xf32>
    %90 = vector.broadcast %28 : vector<1x32xf32> to vector<32x32xf32>
    %91 = arith.mulf %89, %90 : vector<32x32xf32>
    %92 = vector.broadcast %30 : vector<1x32xf32> to vector<32x32xf32>
    %93 = arith.addf %91, %92 : vector<32x32xf32>
    %cst_58 = arith.constant 5.000000e-01 : f32
    %94 = vector.broadcast %cst_58 : f32 to vector<32x32xf32>
    %95 = arith.mulf %94, %93 : vector<32x32xf32>
    %cst_59 = arith.constant 0.707106769 : f32
    %96 = vector.broadcast %cst_59 : f32 to vector<32x32xf32>
    %97 = arith.mulf %93, %96 : vector<32x32xf32>
    %98 = math.erf %97 : vector<32x32xf32>
    %cst_60 = arith.constant 1.000000e+00 : f32
    %99 = vector.broadcast %cst_60 : f32 to vector<32x32xf32>
    %100 = arith.addf %99, %98 : vector<32x32xf32>
    %101 = arith.mulf %95, %100 : vector<32x32xf32>
    %c80_61 = arith.constant 80 : index
    %c0_62 = arith.constant 0 : index
    %102 = vector.load %arg7[%c80_61, %c0_62] : memref<144x32xf32, #tpu.memory_space<vmem>>, vector<32x32xf32>
    tpu.vector_store %arg7[%c80_61, %c0_62], %101 {strides = array<i32>} : memref<144x32xf32, #tpu.memory_space<vmem>>, vector<32x32xf32>,
    %c7_63 = arith.constant 7 : index
    %c0_64 = arith.constant 0 : index
    %103 = tpu.strided_load %arg7[%c7_63, %c0_64] {strides = array<i32: 2, 1>} : memref<144x32xf32, #tpu.memory_space<vmem>>, vector<16x32xf32>
    %c0_65 = arith.constant 0 : index
    %c0_66 = arith.constant 0 : index
    %104 = vector.load %arg8[%c0_65, %c0_66] : memref<64x96xf32, #tpu.memory_space<vmem>>, vector<16x32xf32>
    tpu.vector_store %arg8[%c0_65, %c0_66], %103 {strides = array<i32>} : memref<64x96xf32, #tpu.memory_space<vmem>>, vector<16x32xf32>,
    %c8_67 = arith.constant 8 : index
    %c0_68 = arith.constant 0 : index
    %105 = tpu.strided_load %arg7[%c8_67, %c0_68] {strides = array<i32: 2, 1>} : memref<144x32xf32, #tpu.memory_space<vmem>>, vector<16x32xf32>
    %c0_69 = arith.constant 0 : index
    %c32_70 = arith.constant 32 : index
    %106 = vector.load %arg8[%c0_69, %c32_70] : memref<64x96xf32, #tpu.memory_space<vmem>>, vector<16x32xf32>
    tpu.vector_store %arg8[%c0_69, %c32_70], %105 {strides = array<i32>} : memref<64x96xf32, #tpu.memory_space<vmem>>, vector<16x32xf32>,
    %c9_71 = arith.constant 9 : index
    %c0_72 = arith.constant 0 : index
    %107 = tpu.strided_load %arg7[%c9_71, %c0_72] {strides = array<i32: 2, 1>} : memref<144x32xf32, #tpu.memory_space<vmem>>, vector<16x32xf32>
    %c0_73 = arith.constant 0 : index
    %c64_74 = arith.constant 64 : index
    %108 = vector.load %arg8[%c0_73, %c64_74] : memref<64x96xf32, #tpu.memory_space<vmem>>, vector<16x32xf32>
    tpu.vector_store %arg8[%c0_73, %c64_74], %107 {strides = array<i32>} : memref<64x96xf32, #tpu.memory_space<vmem>>, vector<16x32xf32>,
    %c79_75 = arith.constant 79 : index
    %c0_76 = arith.constant 0 : index
    %109 = tpu.strided_load %arg7[%c79_75, %c0_76] {strides = array<i32: 2, 1>} : memref<144x32xf32, #tpu.memory_space<vmem>>, vector<16x32xf32>
    %c16 = arith.constant 16 : index
    %c0_77 = arith.constant 0 : index
    %110 = vector.load %arg8[%c16, %c0_77] : memref<64x96xf32, #tpu.memory_space<vmem>>, vector<16x32xf32>
    tpu.vector_store %arg8[%c16, %c0_77], %109 {strides = array<i32>} : memref<64x96xf32, #tpu.memory_space<vmem>>, vector<16x32xf32>,
    %c80_78 = arith.constant 80 : index
    %c0_79 = arith.constant 0 : index
    %111 = tpu.strided_load %arg7[%c80_78, %c0_79] {strides = array<i32: 2, 1>} : memref<144x32xf32, #tpu.memory_space<vmem>>, vector<16x32xf32>
    %c16_80 = arith.constant 16 : index
    %c32_81 = arith.constant 32 : index
    %112 = vector.load %arg8[%c16_80, %c32_81] : memref<64x96xf32, #tpu.memory_space<vmem>>, vector<16x32xf32>
    tpu.vector_store %arg8[%c16_80, %c32_81], %111 {strides = array<i32>} : memref<64x96xf32, #tpu.memory_space<vmem>>, vector<16x32xf32>,
    %c81_82 = arith.constant 81 : index
    %c0_83 = arith.constant 0 : index
    %113 = tpu.strided_load %arg7[%c81_82, %c0_83] {strides = array<i32: 2, 1>} : memref<144x32xf32, #tpu.memory_space<vmem>>, vector<16x32xf32>
    %c16_84 = arith.constant 16 : index
    %c64_85 = arith.constant 64 : index
    %114 = vector.load %arg8[%c16_84, %c64_85] : memref<64x96xf32, #tpu.memory_space<vmem>>, vector<16x32xf32>
    tpu.vector_store %arg8[%c16_84, %c64_85], %113 {strides = array<i32>} : memref<64x96xf32, #tpu.memory_space<vmem>>, vector<16x32xf32>,
    %c0_86 = arith.constant 0 : index
    %c0_87 = arith.constant 0 : index
    %115 = vector.load %arg8[%c0_86, %c0_87] : memref<64x96xf32, #tpu.memory_space<vmem>>, vector<32x96xf32>
    %116 = arith.truncf %115 : vector<32x96xf32> to vector<32x96xbf16>
    %c1_88 = arith.constant 1 : index
    %c0_89 = arith.constant 0 : index
    %c0_90 = arith.constant 0 : index
    %117 = vector.load %arg2[%c1_88, %c0_89, %c0_90] : memref<4x96x32xbf16, #tpu.memory_space<vmem>>, vector<1x96x32xbf16>
    %118 = vector.shape_cast %117 : vector<1x96x32xbf16> to vector<96x32xbf16>
    %cst_91 = arith.constant dense<0.000000e+00> : vector<32x32xf32>
    %119 = tpu.matmul %116, %118, %cst_91 {dimension_numbers = #tpu.dot_dimension_numbers<[1], [0], [0], [1], [0, 0, 1, 1], [], []>} : vector<32x96xbf16>, vector<96x32xbf16>, vector<32x32xf32> -> vector<32x32xf32>
    %c1_92 = arith.constant 1 : index
    %c0_93 = arith.constant 0 : index
    %c0_94 = arith.constant 0 : index
    %120 = vector.load %arg3[%c1_92, %c0_93, %c0_94] : memref<4x1x32xf32, #tpu.memory_space<vmem>>, vector<1x1x32xf32>
    %121 = vector.shape_cast %120 : vector<1x1x32xf32> to vector<1x32xf32>
    %c1_95 = arith.constant 1 : index
    %c0_96 = arith.constant 0 : index
    %c0_97 = arith.constant 0 : index
    %122 = vector.load %arg4[%c1_95, %c0_96, %c0_97] : memref<4x1x32xf32, #tpu.memory_space<vmem>>, vector<1x1x32xf32>
    %123 = vector.shape_cast %122 : vector<1x1x32xf32> to vector<1x32xf32>
    %c1_98 = arith.constant 1 : index
    %c0_99 = arith.constant 0 : index
    %c0_100 = arith.constant 0 : index
    %124 = vector.load %arg5[%c1_98, %c0_99, %c0_100] : memref<4x1x32xf32, #tpu.memory_space<vmem>>, vector<1x1x32xf32>
    %125 = vector.shape_cast %124 : vector<1x1x32xf32> to vector<1x32xf32>
    %126 = vector.extract_strided_slice %119 {offsets = [0, 0], sizes = [16, 32], strides = [1, 1]} : vector<32x32xf32> to vector<16x32xf32>
    %127 = vector.broadcast %121 : vector<1x32xf32> to vector<16x32xf32>
    %128 = arith.addf %126, %127 : vector<16x32xf32>
    %129 = vector.shape_cast %128 : vector<16x32xf32> to vector<1x16x32xf32>
    %cst_101 = arith.constant dense<0.000000e+00> : vector<1xf32>
    %130 = vector.multi_reduction <add>, %129, %cst_101 [1, 2] : vector<1x16x32xf32> to vector<1xf32>
    %131 = vector.shape_cast %130 : vector<1xf32> to vector<1x1x1xf32>
    %132 = vector.extract %131[0, 0, 0] : f32 from vector<1x1x1xf32>
    %cst_102 = arith.constant 0.001953125 : f32
    %133 = arith.mulf %132, %cst_102 : f32
    %134 = arith.mulf %128, %128 : vector<16x32xf32>
    %135 = vector.shape_cast %134 : vector<16x32xf32> to vector<1x16x32xf32>
    %cst_103 = arith.constant dense<0.000000e+00> : vector<1xf32>
    %136 = vector.multi_reduction <add>, %135, %cst_103 [1, 2] : vector<1x16x32xf32> to vector<1xf32>
    %137 = vector.shape_cast %136 : vector<1xf32> to vector<1x1x1xf32>
    %138 = vector.extract %137[0, 0, 0] : f32 from vector<1x1x1xf32>
    %cst_104 = arith.constant 0.001953125 : f32
    %139 = arith.mulf %138, %cst_104 : f32
    %140 = arith.mulf %133, %133 : f32
    %141 = arith.subf %139, %140 : f32
    %cst_105 = arith.constant 0.000000e+00 : f32
    %142 = arith.maximumf %141, %cst_105 : f32
    %143 = vector.broadcast %133 : f32 to vector<16x32xf32>
    %144 = arith.subf %128, %143 : vector<16x32xf32>
    %cst_106 = arith.constant 9.99999974E-6 : f32
    %145 = arith.addf %142, %cst_106 : f32
    %146 = math.rsqrt %145 : f32
    %147 = vector.broadcast %146 : f32 to vector<16x32xf32>
    %148 = arith.mulf %144, %147 : vector<16x32xf32>
    %149 = vector.broadcast %123 : vector<1x32xf32> to vector<16x32xf32>
    %150 = arith.mulf %148, %149 : vector<16x32xf32>
    %151 = vector.broadcast %125 : vector<1x32xf32> to vector<16x32xf32>
    %152 = arith.addf %150, %151 : vector<16x32xf32>
    %cst_107 = arith.constant 5.000000e-01 : f32
    %153 = vector.broadcast %cst_107 : f32 to vector<16x32xf32>
    %154 = arith.mulf %153, %152 : vector<16x32xf32>
    %cst_108 = arith.constant 0.707106769 : f32
    %155 = vector.broadcast %cst_108 : f32 to vector<16x32xf32>
    %156 = arith.mulf %152, %155 : vector<16x32xf32>
    %157 = math.erf %156 : vector<16x32xf32>
    %cst_109 = arith.constant 1.000000e+00 : f32
    %158 = vector.broadcast %cst_109 : f32 to vector<16x32xf32>
    %159 = arith.addf %158, %157 : vector<16x32xf32>
    %160 = arith.mulf %154, %159 : vector<16x32xf32>
    %c8_110 = arith.constant 8 : index
    %c0_111 = arith.constant 0 : index
    %161 = vector.load %arg7[%c8_110, %c0_111] : memref<144x32xf32, #tpu.memory_space<vmem>>, vector<16x32xf32>
    tpu.vector_store %arg7[%c8_110, %c0_111], %160 {strides = array<i32>} : memref<144x32xf32, #tpu.memory_space<vmem>>, vector<16x32xf32>,
    %162 = vector.extract_strided_slice %119 {offsets = [16, 0], sizes = [16, 32], strides = [1, 1]} : vector<32x32xf32> to vector<16x32xf32>
    %163 = vector.broadcast %121 : vector<1x32xf32> to vector<16x32xf32>
    %164 = arith.addf %162, %163 : vector<16x32xf32>
    %165 = vector.shape_cast %164 : vector<16x32xf32> to vector<1x16x32xf32>
    %cst_112 = arith.constant dense<0.000000e+00> : vector<1xf32>
    %166 = vector.multi_reduction <add>, %165, %cst_112 [1, 2] : vector<1x16x32xf32> to vector<1xf32>
    %167 = vector.shape_cast %166 : vector<1xf32> to vector<1x1x1xf32>
    %168 = vector.extract %167[0, 0, 0] : f32 from vector<1x1x1xf32>
    %cst_113 = arith.constant 0.001953125 : f32
    %169 = arith.mulf %168, %cst_113 : f32
    %170 = arith.mulf %164, %164 : vector<16x32xf32>
    %171 = vector.shape_cast %170 : vector<16x32xf32> to vector<1x16x32xf32>
    %cst_114 = arith.constant dense<0.000000e+00> : vector<1xf32>
    %172 = vector.multi_reduction <add>, %171, %cst_114 [1, 2] : vector<1x16x32xf32> to vector<1xf32>
    %173 = vector.shape_cast %172 : vector<1xf32> to vector<1x1x1xf32>
    %174 = vector.extract %173[0, 0, 0] : f32 from vector<1x1x1xf32>
    %cst_115 = arith.constant 0.001953125 : f32
    %175 = arith.mulf %174, %cst_115 : f32
    %176 = arith.mulf %169, %169 : f32
    %177 = arith.subf %175, %176 : f32
    %cst_116 = arith.constant 0.000000e+00 : f32
    %178 = arith.maximumf %177, %cst_116 : f32
    %179 = vector.broadcast %169 : f32 to vector<16x32xf32>
    %180 = arith.subf %164, %179 : vector<16x32xf32>
    %cst_117 = arith.constant 9.99999974E-6 : f32
    %181 = arith.addf %178, %cst_117 : f32
    %182 = math.rsqrt %181 : f32
    %183 = vector.broadcast %182 : f32 to vector<16x32xf32>
    %184 = arith.mulf %180, %183 : vector<16x32xf32>
    %185 = vector.broadcast %123 : vector<1x32xf32> to vector<16x32xf32>
    %186 = arith.mulf %184, %185 : vector<16x32xf32>
    %187 = vector.broadcast %125 : vector<1x32xf32> to vector<16x32xf32>
    %188 = arith.addf %186, %187 : vector<16x32xf32>
    %cst_118 = arith.constant 5.000000e-01 : f32
    %189 = vector.broadcast %cst_118 : f32 to vector<16x32xf32>
    %190 = arith.mulf %189, %188 : vector<16x32xf32>
    %cst_119 = arith.constant 0.707106769 : f32
    %191 = vector.broadcast %cst_119 : f32 to vector<16x32xf32>
    %192 = arith.mulf %188, %191 : vector<16x32xf32>
    %193 = math.erf %192 : vector<16x32xf32>
    %cst_120 = arith.constant 1.000000e+00 : f32
    %194 = vector.broadcast %cst_120 : f32 to vector<16x32xf32>
    %195 = arith.addf %194, %193 : vector<16x32xf32>
    %196 = arith.mulf %190, %195 : vector<16x32xf32>
    %c80_121 = arith.constant 80 : index
    %c0_122 = arith.constant 0 : index
    %197 = vector.load %arg7[%c80_121, %c0_122] : memref<144x32xf32, #tpu.memory_space<vmem>>, vector<16x32xf32>
    tpu.vector_store %arg7[%c80_121, %c0_122], %196 {strides = array<i32>} : memref<144x32xf32, #tpu.memory_space<vmem>>, vector<16x32xf32>,
    %c7_123 = arith.constant 7 : index
    %c0_124 = arith.constant 0 : index
    %198 = tpu.strided_load %arg7[%c7_123, %c0_124] {strides = array<i32: 2, 1>} : memref<144x32xf32, #tpu.memory_space<vmem>>, vector<8x32xf32>
    %c0_125 = arith.constant 0 : index
    %c0_126 = arith.constant 0 : index
    %199 = vector.load %arg8[%c0_125, %c0_126] : memref<64x96xf32, #tpu.memory_space<vmem>>, vector<8x32xf32>
    tpu.vector_store %arg8[%c0_125, %c0_126], %198 {strides = array<i32>} : memref<64x96xf32, #tpu.memory_space<vmem>>, vector<8x32xf32>,
    %c8_127 = arith.constant 8 : index
    %c0_128 = arith.constant 0 : index
    %200 = tpu.strided_load %arg7[%c8_127, %c0_128] {strides = array<i32: 2, 1>} : memref<144x32xf32, #tpu.memory_space<vmem>>, vector<8x32xf32>
    %c0_129 = arith.constant 0 : index
    %c32_130 = arith.constant 32 : index
    %201 = vector.load %arg8[%c0_129, %c32_130] : memref<64x96xf32, #tpu.memory_space<vmem>>, vector<8x32xf32>
    tpu.vector_store %arg8[%c0_129, %c32_130], %200 {strides = array<i32>} : memref<64x96xf32, #tpu.memory_space<vmem>>, vector<8x32xf32>,
    %c9_131 = arith.constant 9 : index
    %c0_132 = arith.constant 0 : index
    %202 = tpu.strided_load %arg7[%c9_131, %c0_132] {strides = array<i32: 2, 1>} : memref<144x32xf32, #tpu.memory_space<vmem>>, vector<8x32xf32>
    %c0_133 = arith.constant 0 : index
    %c64_134 = arith.constant 64 : index
    %203 = vector.load %arg8[%c0_133, %c64_134] : memref<64x96xf32, #tpu.memory_space<vmem>>, vector<8x32xf32>
    tpu.vector_store %arg8[%c0_133, %c64_134], %202 {strides = array<i32>} : memref<64x96xf32, #tpu.memory_space<vmem>>, vector<8x32xf32>,
    %c79_135 = arith.constant 79 : index
    %c0_136 = arith.constant 0 : index
    %204 = tpu.strided_load %arg7[%c79_135, %c0_136] {strides = array<i32: 2, 1>} : memref<144x32xf32, #tpu.memory_space<vmem>>, vector<8x32xf32>
    %c8_137 = arith.constant 8 : index
    %c0_138 = arith.constant 0 : index
    %205 = vector.load %arg8[%c8_137, %c0_138] : memref<64x96xf32, #tpu.memory_space<vmem>>, vector<8x32xf32>
    tpu.vector_store %arg8[%c8_137, %c0_138], %204 {strides = array<i32>} : memref<64x96xf32, #tpu.memory_space<vmem>>, vector<8x32xf32>,
    %c80_139 = arith.constant 80 : index
    %c0_140 = arith.constant 0 : index
    %206 = tpu.strided_load %arg7[%c80_139, %c0_140] {strides = array<i32: 2, 1>} : memref<144x32xf32, #tpu.memory_space<vmem>>, vector<8x32xf32>
    %c8_141 = arith.constant 8 : index
    %c32_142 = arith.constant 32 : index
    %207 = vector.load %arg8[%c8_141, %c32_142] : memref<64x96xf32, #tpu.memory_space<vmem>>, vector<8x32xf32>
    tpu.vector_store %arg8[%c8_141, %c32_142], %206 {strides = array<i32>} : memref<64x96xf32, #tpu.memory_space<vmem>>, vector<8x32xf32>,
    %c81_143 = arith.constant 81 : index
    %c0_144 = arith.constant 0 : index
    %208 = tpu.strided_load %arg7[%c81_143, %c0_144] {strides = array<i32: 2, 1>} : memref<144x32xf32, #tpu.memory_space<vmem>>, vector<8x32xf32>
    %c8_145 = arith.constant 8 : index
    %c64_146 = arith.constant 64 : index
    %209 = vector.load %arg8[%c8_145, %c64_146] : memref<64x96xf32, #tpu.memory_space<vmem>>, vector<8x32xf32>
    tpu.vector_store %arg8[%c8_145, %c64_146], %208 {strides = array<i32>} : memref<64x96xf32, #tpu.memory_space<vmem>>, vector<8x32xf32>,
    %c0_147 = arith.constant 0 : index
    %c0_148 = arith.constant 0 : index
    %210 = vector.load %arg8[%c0_147, %c0_148] : memref<64x96xf32, #tpu.memory_space<vmem>>, vector<16x96xf32>
    %211 = arith.truncf %210 : vector<16x96xf32> to vector<16x96xbf16>
    %c2 = arith.constant 2 : index
    %c0_149 = arith.constant 0 : index
    %c0_150 = arith.constant 0 : index
    %212 = vector.load %arg2[%c2, %c0_149, %c0_150] : memref<4x96x32xbf16, #tpu.memory_space<vmem>>, vector<1x96x32xbf16>
    %213 = vector.shape_cast %212 : vector<1x96x32xbf16> to vector<96x32xbf16>
    %cst_151 = arith.constant dense<0.000000e+00> : vector<16x32xf32>
    %214 = tpu.matmul %211, %213, %cst_151 {dimension_numbers = #tpu.dot_dimension_numbers<[1], [0], [0], [1], [0, 0, 1, 1], [], []>} : vector<16x96xbf16>, vector<96x32xbf16>, vector<16x32xf32> -> vector<16x32xf32>
    %c2_152 = arith.constant 2 : index
    %c0_153 = arith.constant 0 : index
    %c0_154 = arith.constant 0 : index
    %215 = vector.load %arg3[%c2_152, %c0_153, %c0_154] : memref<4x1x32xf32, #tpu.memory_space<vmem>>, vector<1x1x32xf32>
    %216 = vector.shape_cast %215 : vector<1x1x32xf32> to vector<1x32xf32>
    %c2_155 = arith.constant 2 : index
    %c0_156 = arith.constant 0 : index
    %c0_157 = arith.constant 0 : index
    %217 = vector.load %arg4[%c2_155, %c0_156, %c0_157] : memref<4x1x32xf32, #tpu.memory_space<vmem>>, vector<1x1x32xf32>
    %218 = vector.shape_cast %217 : vector<1x1x32xf32> to vector<1x32xf32>
    %c2_158 = arith.constant 2 : index
    %c0_159 = arith.constant 0 : index
    %c0_160 = arith.constant 0 : index
    %219 = vector.load %arg5[%c2_158, %c0_159, %c0_160] : memref<4x1x32xf32, #tpu.memory_space<vmem>>, vector<1x1x32xf32>
    %220 = vector.shape_cast %219 : vector<1x1x32xf32> to vector<1x32xf32>
    %221 = vector.extract_strided_slice %214 {offsets = [0, 0], sizes = [8, 32], strides = [1, 1]} : vector<16x32xf32> to vector<8x32xf32>
    %222 = vector.broadcast %216 : vector<1x32xf32> to vector<8x32xf32>
    %223 = arith.addf %221, %222 : vector<8x32xf32>
    %224 = vector.shape_cast %223 : vector<8x32xf32> to vector<1x8x32xf32>
    %cst_161 = arith.constant dense<0.000000e+00> : vector<1xf32>
    %225 = vector.multi_reduction <add>, %224, %cst_161 [1, 2] : vector<1x8x32xf32> to vector<1xf32>
    %226 = vector.shape_cast %225 : vector<1xf32> to vector<1x1x1xf32>
    %227 = vector.extract %226[0, 0, 0] : f32 from vector<1x1x1xf32>
    %cst_162 = arith.constant 3.906250e-03 : f32
    %228 = arith.mulf %227, %cst_162 : f32
    %229 = arith.mulf %223, %223 : vector<8x32xf32>
    %230 = vector.shape_cast %229 : vector<8x32xf32> to vector<1x8x32xf32>
    %cst_163 = arith.constant dense<0.000000e+00> : vector<1xf32>
    %231 = vector.multi_reduction <add>, %230, %cst_163 [1, 2] : vector<1x8x32xf32> to vector<1xf32>
    %232 = vector.shape_cast %231 : vector<1xf32> to vector<1x1x1xf32>
    %233 = vector.extract %232[0, 0, 0] : f32 from vector<1x1x1xf32>
    %cst_164 = arith.constant 3.906250e-03 : f32
    %234 = arith.mulf %233, %cst_164 : f32
    %235 = arith.mulf %228, %228 : f32
    %236 = arith.subf %234, %235 : f32
    %cst_165 = arith.constant 0.000000e+00 : f32
    %237 = arith.maximumf %236, %cst_165 : f32
    %238 = vector.broadcast %228 : f32 to vector<8x32xf32>
    %239 = arith.subf %223, %238 : vector<8x32xf32>
    %cst_166 = arith.constant 9.99999974E-6 : f32
    %240 = arith.addf %237, %cst_166 : f32
    %241 = math.rsqrt %240 : f32
    %242 = vector.broadcast %241 : f32 to vector<8x32xf32>
    %243 = arith.mulf %239, %242 : vector<8x32xf32>
    %244 = vector.broadcast %218 : vector<1x32xf32> to vector<8x32xf32>
    %245 = arith.mulf %243, %244 : vector<8x32xf32>
    %246 = vector.broadcast %220 : vector<1x32xf32> to vector<8x32xf32>
    %247 = arith.addf %245, %246 : vector<8x32xf32>
    %cst_167 = arith.constant 5.000000e-01 : f32
    %248 = vector.broadcast %cst_167 : f32 to vector<8x32xf32>
    %249 = arith.mulf %248, %247 : vector<8x32xf32>
    %cst_168 = arith.constant 0.707106769 : f32
    %250 = vector.broadcast %cst_168 : f32 to vector<8x32xf32>
    %251 = arith.mulf %247, %250 : vector<8x32xf32>
    %252 = math.erf %251 : vector<8x32xf32>
    %cst_169 = arith.constant 1.000000e+00 : f32
    %253 = vector.broadcast %cst_169 : f32 to vector<8x32xf32>
    %254 = arith.addf %253, %252 : vector<8x32xf32>
    %255 = arith.mulf %249, %254 : vector<8x32xf32>
    %c8_170 = arith.constant 8 : index
    %c0_171 = arith.constant 0 : index
    %256 = vector.load %arg7[%c8_170, %c0_171] : memref<144x32xf32, #tpu.memory_space<vmem>>, vector<8x32xf32>
    tpu.vector_store %arg7[%c8_170, %c0_171], %255 {strides = array<i32>} : memref<144x32xf32, #tpu.memory_space<vmem>>, vector<8x32xf32>,
    %257 = vector.extract_strided_slice %214 {offsets = [8, 0], sizes = [8, 32], strides = [1, 1]} : vector<16x32xf32> to vector<8x32xf32>
    %258 = vector.broadcast %216 : vector<1x32xf32> to vector<8x32xf32>
    %259 = arith.addf %257, %258 : vector<8x32xf32>
    %260 = vector.shape_cast %259 : vector<8x32xf32> to vector<1x8x32xf32>
    %cst_172 = arith.constant dense<0.000000e+00> : vector<1xf32>
    %261 = vector.multi_reduction <add>, %260, %cst_172 [1, 2] : vector<1x8x32xf32> to vector<1xf32>
    %262 = vector.shape_cast %261 : vector<1xf32> to vector<1x1x1xf32>
    %263 = vector.extract %262[0, 0, 0] : f32 from vector<1x1x1xf32>
    %cst_173 = arith.constant 3.906250e-03 : f32
    %264 = arith.mulf %263, %cst_173 : f32
    %265 = arith.mulf %259, %259 : vector<8x32xf32>
    %266 = vector.shape_cast %265 : vector<8x32xf32> to vector<1x8x32xf32>
    %cst_174 = arith.constant dense<0.000000e+00> : vector<1xf32>
    %267 = vector.multi_reduction <add>, %266, %cst_174 [1, 2] : vector<1x8x32xf32> to vector<1xf32>
    %268 = vector.shape_cast %267 : vector<1xf32> to vector<1x1x1xf32>
    %269 = vector.extract %268[0, 0, 0] : f32 from vector<1x1x1xf32>
    %cst_175 = arith.constant 3.906250e-03 : f32
    %270 = arith.mulf %269, %cst_175 : f32
    %271 = arith.mulf %264, %264 : f32
    %272 = arith.subf %270, %271 : f32
    %cst_176 = arith.constant 0.000000e+00 : f32
    %273 = arith.maximumf %272, %cst_176 : f32
    %274 = vector.broadcast %264 : f32 to vector<8x32xf32>
    %275 = arith.subf %259, %274 : vector<8x32xf32>
    %cst_177 = arith.constant 9.99999974E-6 : f32
    %276 = arith.addf %273, %cst_177 : f32
    %277 = math.rsqrt %276 : f32
    %278 = vector.broadcast %277 : f32 to vector<8x32xf32>
    %279 = arith.mulf %275, %278 : vector<8x32xf32>
    %280 = vector.broadcast %218 : vector<1x32xf32> to vector<8x32xf32>
    %281 = arith.mulf %279, %280 : vector<8x32xf32>
    %282 = vector.broadcast %220 : vector<1x32xf32> to vector<8x32xf32>
    %283 = arith.addf %281, %282 : vector<8x32xf32>
    %cst_178 = arith.constant 5.000000e-01 : f32
    %284 = vector.broadcast %cst_178 : f32 to vector<8x32xf32>
    %285 = arith.mulf %284, %283 : vector<8x32xf32>
    %cst_179 = arith.constant 0.707106769 : f32
    %286 = vector.broadcast %cst_179 : f32 to vector<8x32xf32>
    %287 = arith.mulf %283, %286 : vector<8x32xf32>
    %288 = math.erf %287 : vector<8x32xf32>
    %cst_180 = arith.constant 1.000000e+00 : f32
    %289 = vector.broadcast %cst_180 : f32 to vector<8x32xf32>
    %290 = arith.addf %289, %288 : vector<8x32xf32>
    %291 = arith.mulf %285, %290 : vector<8x32xf32>
    %c80_181 = arith.constant 80 : index
    %c0_182 = arith.constant 0 : index
    %292 = vector.load %arg7[%c80_181, %c0_182] : memref<144x32xf32, #tpu.memory_space<vmem>>, vector<8x32xf32>
    tpu.vector_store %arg7[%c80_181, %c0_182], %291 {strides = array<i32>} : memref<144x32xf32, #tpu.memory_space<vmem>>, vector<8x32xf32>,
    %c7_183 = arith.constant 7 : index
    %c0_184 = arith.constant 0 : index
    %293 = tpu.strided_load %arg7[%c7_183, %c0_184] {strides = array<i32: 2, 1>} : memref<144x32xf32, #tpu.memory_space<vmem>>, vector<4x32xf32>
    %c0_185 = arith.constant 0 : index
    %c0_186 = arith.constant 0 : index
    %294 = vector.load %arg8[%c0_185, %c0_186] : memref<64x96xf32, #tpu.memory_space<vmem>>, vector<4x32xf32>
    tpu.vector_store %arg8[%c0_185, %c0_186], %293 {strides = array<i32>} : memref<64x96xf32, #tpu.memory_space<vmem>>, vector<4x32xf32>,
    %c8_187 = arith.constant 8 : index
    %c0_188 = arith.constant 0 : index
    %295 = tpu.strided_load %arg7[%c8_187, %c0_188] {strides = array<i32: 2, 1>} : memref<144x32xf32, #tpu.memory_space<vmem>>, vector<4x32xf32>
    %c0_189 = arith.constant 0 : index
    %c32_190 = arith.constant 32 : index
    %296 = vector.load %arg8[%c0_189, %c32_190] : memref<64x96xf32, #tpu.memory_space<vmem>>, vector<4x32xf32>
    tpu.vector_store %arg8[%c0_189, %c32_190], %295 {strides = array<i32>} : memref<64x96xf32, #tpu.memory_space<vmem>>, vector<4x32xf32>,
    %c9_191 = arith.constant 9 : index
    %c0_192 = arith.constant 0 : index
    %297 = tpu.strided_load %arg7[%c9_191, %c0_192] {strides = array<i32: 2, 1>} : memref<144x32xf32, #tpu.memory_space<vmem>>, vector<4x32xf32>
    %c0_193 = arith.constant 0 : index
    %c64_194 = arith.constant 64 : index
    %298 = vector.load %arg8[%c0_193, %c64_194] : memref<64x96xf32, #tpu.memory_space<vmem>>, vector<4x32xf32>
    tpu.vector_store %arg8[%c0_193, %c64_194], %297 {strides = array<i32>} : memref<64x96xf32, #tpu.memory_space<vmem>>, vector<4x32xf32>,
    %c79_195 = arith.constant 79 : index
    %c0_196 = arith.constant 0 : index
    %299 = tpu.strided_load %arg7[%c79_195, %c0_196] {strides = array<i32: 2, 1>} : memref<144x32xf32, #tpu.memory_space<vmem>>, vector<4x32xf32>
    %c8_197 = arith.constant 8 : index
    %c0_198 = arith.constant 0 : index
    %300 = vector.load %arg8[%c8_197, %c0_198] : memref<64x96xf32, #tpu.memory_space<vmem>>, vector<4x32xf32>
    tpu.vector_store %arg8[%c8_197, %c0_198], %299 {strides = array<i32>} : memref<64x96xf32, #tpu.memory_space<vmem>>, vector<4x32xf32>,
    %c80_199 = arith.constant 80 : index
    %c0_200 = arith.constant 0 : index
    %301 = tpu.strided_load %arg7[%c80_199, %c0_200] {strides = array<i32: 2, 1>} : memref<144x32xf32, #tpu.memory_space<vmem>>, vector<4x32xf32>
    %c8_201 = arith.constant 8 : index
    %c32_202 = arith.constant 32 : index
    %302 = vector.load %arg8[%c8_201, %c32_202] : memref<64x96xf32, #tpu.memory_space<vmem>>, vector<4x32xf32>
    tpu.vector_store %arg8[%c8_201, %c32_202], %301 {strides = array<i32>} : memref<64x96xf32, #tpu.memory_space<vmem>>, vector<4x32xf32>,
    %c81_203 = arith.constant 81 : index
    %c0_204 = arith.constant 0 : index
    %303 = tpu.strided_load %arg7[%c81_203, %c0_204] {strides = array<i32: 2, 1>} : memref<144x32xf32, #tpu.memory_space<vmem>>, vector<4x32xf32>
    %c8_205 = arith.constant 8 : index
    %c64_206 = arith.constant 64 : index
    %304 = vector.load %arg8[%c8_205, %c64_206] : memref<64x96xf32, #tpu.memory_space<vmem>>, vector<4x32xf32>
    tpu.vector_store %arg8[%c8_205, %c64_206], %303 {strides = array<i32>} : memref<64x96xf32, #tpu.memory_space<vmem>>, vector<4x32xf32>,
    %c0_207 = arith.constant 0 : index
    %c0_208 = arith.constant 0 : index
    %305 = vector.load %arg8[%c0_207, %c0_208] : memref<64x96xf32, #tpu.memory_space<vmem>>, vector<16x96xf32>
    %306 = arith.truncf %305 : vector<16x96xf32> to vector<16x96xbf16>
    %c3 = arith.constant 3 : index
    %c0_209 = arith.constant 0 : index
    %c0_210 = arith.constant 0 : index
    %307 = vector.load %arg2[%c3, %c0_209, %c0_210] : memref<4x96x32xbf16, #tpu.memory_space<vmem>>, vector<1x96x32xbf16>
    %308 = vector.shape_cast %307 : vector<1x96x32xbf16> to vector<96x32xbf16>
    %cst_211 = arith.constant dense<0.000000e+00> : vector<16x32xf32>
    %309 = tpu.matmul %306, %308, %cst_211 {dimension_numbers = #tpu.dot_dimension_numbers<[1], [0], [0], [1], [0, 0, 1, 1], [], []>} : vector<16x96xbf16>, vector<96x32xbf16>, vector<16x32xf32> -> vector<16x32xf32>
    %c3_212 = arith.constant 3 : index
    %c0_213 = arith.constant 0 : index
    %c0_214 = arith.constant 0 : index
    %310 = vector.load %arg3[%c3_212, %c0_213, %c0_214] : memref<4x1x32xf32, #tpu.memory_space<vmem>>, vector<1x1x32xf32>
    %311 = vector.shape_cast %310 : vector<1x1x32xf32> to vector<1x32xf32>
    %c3_215 = arith.constant 3 : index
    %c0_216 = arith.constant 0 : index
    %c0_217 = arith.constant 0 : index
    %312 = vector.load %arg4[%c3_215, %c0_216, %c0_217] : memref<4x1x32xf32, #tpu.memory_space<vmem>>, vector<1x1x32xf32>
    %313 = vector.shape_cast %312 : vector<1x1x32xf32> to vector<1x32xf32>
    %c3_218 = arith.constant 3 : index
    %c0_219 = arith.constant 0 : index
    %c0_220 = arith.constant 0 : index
    %314 = vector.load %arg5[%c3_218, %c0_219, %c0_220] : memref<4x1x32xf32, #tpu.memory_space<vmem>>, vector<1x1x32xf32>
    %315 = vector.shape_cast %314 : vector<1x1x32xf32> to vector<1x32xf32>
    %316 = vector.extract_strided_slice %309 {offsets = [0, 0], sizes = [4, 32], strides = [1, 1]} : vector<16x32xf32> to vector<4x32xf32>
    %317 = vector.broadcast %311 : vector<1x32xf32> to vector<4x32xf32>
    %318 = arith.addf %316, %317 : vector<4x32xf32>
    %319 = vector.shape_cast %318 : vector<4x32xf32> to vector<1x4x32xf32>
    %cst_221 = arith.constant dense<0.000000e+00> : vector<1xf32>
    %320 = vector.multi_reduction <add>, %319, %cst_221 [1, 2] : vector<1x4x32xf32> to vector<1xf32>
    %321 = vector.shape_cast %320 : vector<1xf32> to vector<1x1x1xf32>
    %322 = vector.extract %321[0, 0, 0] : f32 from vector<1x1x1xf32>
    %cst_222 = arith.constant 7.812500e-03 : f32
    %323 = arith.mulf %322, %cst_222 : f32
    %324 = arith.mulf %318, %318 : vector<4x32xf32>
    %325 = vector.shape_cast %324 : vector<4x32xf32> to vector<1x4x32xf32>
    %cst_223 = arith.constant dense<0.000000e+00> : vector<1xf32>
    %326 = vector.multi_reduction <add>, %325, %cst_223 [1, 2] : vector<1x4x32xf32> to vector<1xf32>
    %327 = vector.shape_cast %326 : vector<1xf32> to vector<1x1x1xf32>
    %328 = vector.extract %327[0, 0, 0] : f32 from vector<1x1x1xf32>
    %cst_224 = arith.constant 7.812500e-03 : f32
    %329 = arith.mulf %328, %cst_224 : f32
    %330 = arith.mulf %323, %323 : f32
    %331 = arith.subf %329, %330 : f32
    %cst_225 = arith.constant 0.000000e+00 : f32
    %332 = arith.maximumf %331, %cst_225 : f32
    %333 = vector.broadcast %323 : f32 to vector<4x32xf32>
    %334 = arith.subf %318, %333 : vector<4x32xf32>
    %cst_226 = arith.constant 9.99999974E-6 : f32
    %335 = arith.addf %332, %cst_226 : f32
    %336 = math.rsqrt %335 : f32
    %337 = vector.broadcast %336 : f32 to vector<4x32xf32>
    %338 = arith.mulf %334, %337 : vector<4x32xf32>
    %339 = vector.broadcast %313 : vector<1x32xf32> to vector<4x32xf32>
    %340 = arith.mulf %338, %339 : vector<4x32xf32>
    %341 = vector.broadcast %315 : vector<1x32xf32> to vector<4x32xf32>
    %342 = arith.addf %340, %341 : vector<4x32xf32>
    %cst_227 = arith.constant 5.000000e-01 : f32
    %343 = vector.broadcast %cst_227 : f32 to vector<4x32xf32>
    %344 = arith.mulf %343, %342 : vector<4x32xf32>
    %cst_228 = arith.constant 0.707106769 : f32
    %345 = vector.broadcast %cst_228 : f32 to vector<4x32xf32>
    %346 = arith.mulf %342, %345 : vector<4x32xf32>
    %347 = math.erf %346 : vector<4x32xf32>
    %cst_229 = arith.constant 1.000000e+00 : f32
    %348 = vector.broadcast %cst_229 : f32 to vector<4x32xf32>
    %349 = arith.addf %348, %347 : vector<4x32xf32>
    %350 = arith.mulf %344, %349 : vector<4x32xf32>
    %c0_230 = arith.constant 0 : index
    %c0_231 = arith.constant 0 : index
    %c0_232 = arith.constant 0 : index
    %351 = vector.load %arg6[%c0_230, %c0_231, %c0_232] : memref<2x4x32xf32, #tpu.memory_space<vmem>>, vector<1x4x32xf32>
    %352 = vector.shape_cast %351 : vector<1x4x32xf32> to vector<4x32xf32>
    %353 = vector.shape_cast %350 : vector<4x32xf32> to vector<1x4x32xf32>
    tpu.vector_store %arg6[%c0_230, %c0_231, %c0_232], %353 {strides = array<i32>} : memref<2x4x32xf32, #tpu.memory_space<vmem>>, vector<1x4x32xf32>,
    %354 = vector.extract_strided_slice %309 {offsets = [8, 0], sizes = [4, 32], strides = [1, 1]} : vector<16x32xf32> to vector<4x32xf32>
    %355 = vector.broadcast %311 : vector<1x32xf32> to vector<4x32xf32>
    %356 = arith.addf %354, %355 : vector<4x32xf32>
    %357 = vector.shape_cast %356 : vector<4x32xf32> to vector<1x4x32xf32>
    %cst_233 = arith.constant dense<0.000000e+00> : vector<1xf32>
    %358 = vector.multi_reduction <add>, %357, %cst_233 [1, 2] : vector<1x4x32xf32> to vector<1xf32>
    %359 = vector.shape_cast %358 : vector<1xf32> to vector<1x1x1xf32>
    %360 = vector.extract %359[0, 0, 0] : f32 from vector<1x1x1xf32>
    %cst_234 = arith.constant 7.812500e-03 : f32
    %361 = arith.mulf %360, %cst_234 : f32
    %362 = arith.mulf %356, %356 : vector<4x32xf32>
    %363 = vector.shape_cast %362 : vector<4x32xf32> to vector<1x4x32xf32>
    %cst_235 = arith.constant dense<0.000000e+00> : vector<1xf32>
    %364 = vector.multi_reduction <add>, %363, %cst_235 [1, 2] : vector<1x4x32xf32> to vector<1xf32>
    %365 = vector.shape_cast %364 : vector<1xf32> to vector<1x1x1xf32>
    %366 = vector.extract %365[0, 0, 0] : f32 from vector<1x1x1xf32>
    %cst_236 = arith.constant 7.812500e-03 : f32
    %367 = arith.mulf %366, %cst_236 : f32
    %368 = arith.mulf %361, %361 : f32
    %369 = arith.subf %367, %368 : f32
    %cst_237 = arith.constant 0.000000e+00 : f32
    %370 = arith.maximumf %369, %cst_237 : f32
    %371 = vector.broadcast %361 : f32 to vector<4x32xf32>
    %372 = arith.subf %356, %371 : vector<4x32xf32>
    %cst_238 = arith.constant 9.99999974E-6 : f32
    %373 = arith.addf %370, %cst_238 : f32
    %374 = math.rsqrt %373 : f32
    %375 = vector.broadcast %374 : f32 to vector<4x32xf32>
    %376 = arith.mulf %372, %375 : vector<4x32xf32>
    %377 = vector.broadcast %313 : vector<1x32xf32> to vector<4x32xf32>
    %378 = arith.mulf %376, %377 : vector<4x32xf32>
    %379 = vector.broadcast %315 : vector<1x32xf32> to vector<4x32xf32>
    %380 = arith.addf %378, %379 : vector<4x32xf32>
    %cst_239 = arith.constant 5.000000e-01 : f32
    %381 = vector.broadcast %cst_239 : f32 to vector<4x32xf32>
    %382 = arith.mulf %381, %380 : vector<4x32xf32>
    %cst_240 = arith.constant 0.707106769 : f32
    %383 = vector.broadcast %cst_240 : f32 to vector<4x32xf32>
    %384 = arith.mulf %380, %383 : vector<4x32xf32>
    %385 = math.erf %384 : vector<4x32xf32>
    %cst_241 = arith.constant 1.000000e+00 : f32
    %386 = vector.broadcast %cst_241 : f32 to vector<4x32xf32>
    %387 = arith.addf %386, %385 : vector<4x32xf32>
    %388 = arith.mulf %382, %387 : vector<4x32xf32>
    %c1_242 = arith.constant 1 : index
    %c0_243 = arith.constant 0 : index
    %c0_244 = arith.constant 0 : index
    %389 = vector.load %arg6[%c1_242, %c0_243, %c0_244] : memref<2x4x32xf32, #tpu.memory_space<vmem>>, vector<1x4x32xf32>
    %390 = vector.shape_cast %389 : vector<1x4x32xf32> to vector<4x32xf32>
    %391 = vector.shape_cast %388 : vector<4x32xf32> to vector<1x4x32xf32>
    tpu.vector_store %arg6[%c1_242, %c0_243, %c0_244], %391 {strides = array<i32>} : memref<2x4x32xf32, #tpu.memory_space<vmem>>, vector<1x4x32xf32>,
    return
  }
  func.func @transform_0(%arg0: i32) -> (i32, i32, i32) {
    %c0_i32 = arith.constant 0 : i32
    %c0_i32_0 = arith.constant 0 : i32
    %c0_i32_1 = arith.constant 0 : i32
    return %arg0, %c0_i32, %c0_i32_0 : i32, i32, i32
  }
  func.func @transform_1(%arg0: i32) -> (i32, i32, i32) {
    %c0_i32 = arith.constant 0 : i32
    %c0_i32_0 = arith.constant 0 : i32
    %c0_i32_1 = arith.constant 0 : i32
    %c0_i32_2 = arith.constant 0 : i32
    return %c0_i32, %c0_i32_0, %c0_i32_1 : i32, i32, i32
  }
  func.func @transform_2(%arg0: i32) -> (i32, i32, i32) {
    %c0_i32 = arith.constant 0 : i32
    %c0_i32_0 = arith.constant 0 : i32
    %c0_i32_1 = arith.constant 0 : i32
    %c0_i32_2 = arith.constant 0 : i32
    return %c0_i32, %c0_i32_0, %c0_i32_1 : i32, i32, i32
  }
  func.func @transform_3(%arg0: i32) -> (i32, i32, i32) {
    %c0_i32 = arith.constant 0 : i32
    %c0_i32_0 = arith.constant 0 : i32
    %c0_i32_1 = arith.constant 0 : i32
    %c0_i32_2 = arith.constant 0 : i32
    return %c0_i32, %c0_i32_0, %c0_i32_1 : i32, i32, i32
  }
  func.func @transform_4(%arg0: i32) -> (i32, i32, i32) {
    %c0_i32 = arith.constant 0 : i32
    %c0_i32_0 = arith.constant 0 : i32
    %c0_i32_1 = arith.constant 0 : i32
    %c0_i32_2 = arith.constant 0 : i32
    return %c0_i32, %c0_i32_0, %c0_i32_1 : i32, i32, i32
  }
  func.func @transform_5(%arg0: i32) -> (i32, i32, i32) {
    %c0_i32 = arith.constant 0 : i32
    %c0_i32_0 = arith.constant 0 : i32
    %c0_i32_1 = arith.constant 0 : i32
    return %arg0, %c0_i32, %c0_i32_0 : i32, i32, i32
  }
}

</mosaic_0001>

<llo_original>
// kernel: conv_encoder_tueg_forward.1
$region0: #{conv_encoder_tueg_forward.1}
  #allocation0 [shape = 'u32[]', space=smem, size = 0x4, offset = 0x4, fixed_abs, tag = 'smem constant byte address 0x4 - core index']
  #allocation1 [shape = 'u32[72,128]{1,0:T(1,128)}', space=vmem, size = 0x9000, scoped, tag = 'internal scratch']
  #allocation2 [shape = 'f32[144,32]{1,0:T(8,128)}', space=vmem, size = 0x12000, scoped, tag = 'scratch operand']
  #allocation3 [shape = 'f32[64,96]{1,0:T(8,128)}', space=vmem, size = 0x8000, scoped, tag = 'scratch operand']
  %s0 = inlined_call_operand.vmem [shape: f32[2,64,19], index: 0, kind: input, shape index: {}]
  %s1 = inlined_call_operand.vmem [shape: bf16[4,96,32], index: 1, kind: input, shape index: {}]
  %s2 = inlined_call_operand.vmem [shape: f32[4,1,32], index: 2, kind: input, shape index: {}]
  %s3 = inlined_call_operand.vmem [shape: f32[4,1,32], index: 3, kind: input, shape index: {}]
  %s4 = inlined_call_operand.vmem [shape: f32[4,1,32], index: 4, kind: input, shape index: {}]
  %s5 = inlined_call_operand.hbm [shape: f32[2,4,32], index: 5, kind: output, shape index: {}]
  %s6 = sld [smem:[#allocation0]]
  $region30: #{conv_encoder_tueg_forward.1} parent=0
    _
  %s8 = ssub.s32 1, %s6
  %s9 = scalar_select 0, %s8, %s6
  $region1: #{conv_encoder_tueg_forward.1} parent=0
    #allocation4 [shape = 'u8[4096]{0}', space=vmem, size = 0x1000, scoped, tag = 'output window, operand 0, single buffered']
    #allocation5 [shape = 's32[1]{0}', space=sflag, size = 0x4, scoped, tag = 'scoped memory for conv_encoder_tueg_forward.1']
    %10 = vsyncpa [#allocation5], 0
    // Predicated region
    $region2: #{conv_encoder_tueg_forward.1} parent=1 // pred_check
      _
    $region3: #{conv_encoder_tueg_forward.1} parent=1 // pred_check_branch
      %12 = sbr.rel (0) target = $region5
    $region4: #{conv_encoder_tueg_forward.1} parent=1 // pred_region
      _
    $region5: #{conv_encoder_tueg_forward.1} parent=1 // pred_fallthru
      _
    // Predicated region
    $region6: #{conv_encoder_tueg_forward.1} parent=1 // pred_check
      _
    $region7: #{conv_encoder_tueg_forward.1} parent=1 // pred_check_branch
      %14 = sbr.rel (0) target = $region9
    $region8: #{conv_encoder_tueg_forward.1} parent=1 // pred_region
      _
    $region9: #{conv_encoder_tueg_forward.1} parent=1 // pred_fallthru
      _
    // Predicated region
    $region10: #{conv_encoder_tueg_forward.1} parent=1 // pred_check
      _
    $region11: #{conv_encoder_tueg_forward.1} parent=1 // pred_check_branch
      %16 = sbr.rel (0) target = $region13
    $region12: #{conv_encoder_tueg_forward.1} parent=1 // pred_region
      _
    $region13: #{conv_encoder_tueg_forward.1} parent=1 // pred_fallthru
      _
    // Predicated region
    $region14: #{conv_encoder_tueg_forward.1} parent=1 // pred_check
      _
    $region15: #{conv_encoder_tueg_forward.1} parent=1 // pred_check_branch
      %18 = sbr.rel (0) target = $region17
    $region16: #{conv_encoder_tueg_forward.1} parent=1 // pred_region
      _
    $region17: #{conv_encoder_tueg_forward.1} parent=1 // pred_fallthru
      _
    // Predicated region
    $region18: #{conv_encoder_tueg_forward.1} parent=1 // pred_check
      _
    $region19: #{conv_encoder_tueg_forward.1} parent=1 // pred_check_branch
      %20 = sbr.rel (0) target = $region21
    $region20: #{conv_encoder_tueg_forward.1} parent=1 // pred_region
      _
    $region21: #{conv_encoder_tueg_forward.1} parent=1 // pred_fallthru
      _
    %vm22 = vcmask 261120
    %23 = vst.msk [vmem:[#allocation2] sm:$0xff] %vm22, 0.0
    %24 = vst.msk [vmem:[#allocation2 + $0x8] sm:$0xff] %vm22, 0.0
    %25 = vst.msk [vmem:[#allocation2 + $0x10] sm:$0xff] %vm22, 0.0
    %26 = vst.msk [vmem:[#allocation2 + $0x18] sm:$0xff] %vm22, 0.0
    %27 = vst.msk [vmem:[#allocation2 + $0x20] sm:$0xff] %vm22, 0.0
    %28 = vst.msk [vmem:[#allocation2 + $0x28] sm:$0xff] %vm22, 0.0
    %29 = vst.msk [vmem:[#allocation2 + $0x30] sm:$0xff] %vm22, 0.0
    %30 = vst.msk [vmem:[#allocation2 + $0x38] sm:$0xff] %vm22, 0.0
    %31 = vst.msk [vmem:[#allocation2 + $0x40] sm:$0xff] %vm22, 0.0
    %32 = vst.msk [vmem:[#allocation2 + $0x48] sm:$0xff] %vm22, 0.0
    %33 = vst.msk [vmem:[#allocation2 + $0x50] sm:$0xff] %vm22, 0.0
    %34 = vst.msk [vmem:[#allocation2 + $0x58] sm:$0xff] %vm22, 0.0
    %35 = vst.msk [vmem:[#allocation2 + $0x60] sm:$0xff] %vm22, 0.0
    %36 = vst.msk [vmem:[#allocation2 + $0x68] sm:$0xff] %vm22, 0.0
    %37 = vst.msk [vmem:[#allocation2 + $0x70] sm:$0xff] %vm22, 0.0
    %38 = vst.msk [vmem:[#allocation2 + $0x78] sm:$0xff] %vm22, 0.0
    %39 = vst.msk [vmem:[#allocation2 + $0x80] sm:$0xff] %vm22, 0.0
    %40 = vst.msk [vmem:[#allocation2 + $0x88] sm:$0xff] %vm22, 0.0
    %v41 = vld [vmem:[%s0] sm:$0xff]
    %v42 = vld [vmem:[%s0 + $0x8] sm:$0xff]
    %v43 = vld [vmem:[%s0 + $0x10] sm:$0xff]
    %v44 = vld [vmem:[%s0 + $0x18] sm:$0xff]
    %v45 = vld [vmem:[%s0 + $0x20] sm:$0xff]
    %v46 = vld [vmem:[%s0 + $0x28] sm:$0xff]
    %v47 = vld [vmem:[%s0 + $0x30] sm:$0xff]
    %v48 = vld [vmem:[%s0 + $0x38] sm:$0xff]
    %vm49 = vcmask 154624
    %50 = vst.msk [vmem:[#allocation2 + $0x8] sm:$0xff] %vm49, %v41
    %51 = vst.msk [vmem:[#allocation2 + $0x10] sm:$0xff] %vm49, %v42
    %52 = vst.msk [vmem:[#allocation2 + $0x18] sm:$0xff] %vm49, %v43
    %53 = vst.msk [vmem:[#allocation2 + $0x20] sm:$0xff] %vm49, %v44
    %54 = vst.msk [vmem:[#allocation2 + $0x28] sm:$0xff] %vm49, %v45
    %55 = vst.msk [vmem:[#allocation2 + $0x30] sm:$0xff] %vm49, %v46
    %56 = vst.msk [vmem:[#allocation2 + $0x38] sm:$0xff] %vm49, %v47
    %57 = vst.msk [vmem:[#allocation2 + $0x40] sm:$0xff] %vm49, %v48
    %s58 = scalar_lea.vmem %s0, 64
    %v59 = vld [vmem:[%s58] sm:$0xff]
    %v60 = vld [vmem:[%s58 + $0x8] sm:$0xff]
    %v61 = vld [vmem:[%s58 + $0x10] sm:$0xff]
    %v62 = vld [vmem:[%s58 + $0x18] sm:$0xff]
    %v63 = vld [vmem:[%s58 + $0x20] sm:$0xff]
    %v64 = vld [vmem:[%s58 + $0x28] sm:$0xff]
    %v65 = vld [vmem:[%s58 + $0x30] sm:$0xff]
    %v66 = vld [vmem:[%s58 + $0x38] sm:$0xff]
    %67 = vst.msk [vmem:[#allocation2 + $0x50] sm:$0xff] %vm49, %v59
    %68 = vst.msk [vmem:[#allocation2 + $0x58] sm:$0xff] %vm49, %v60
    %69 = vst.msk [vmem:[#allocation2 + $0x60] sm:$0xff] %vm49, %v61
    %70 = vst.msk [vmem:[#allocation2 + $0x68] sm:$0xff] %vm49, %v62
    %71 = vst.msk [vmem:[#allocation2 + $0x70] sm:$0xff] %vm49, %v63
    %72 = vst.msk [vmem:[#allocation2 + $0x78] sm:$0xff] %vm49, %v64
    %73 = vst.msk [vmem:[#allocation2 + $0x80] sm:$0xff] %vm49, %v65
    %74 = vst.msk [vmem:[#allocation2 + $0x88] sm:$0xff] %vm49, %v66
    %s75 = scalar_lea.vmem [#allocation2], 7
    %v76 = vld [vmem:[%s75] ss:$2 sm:$0xff]
    %s77 = scalar_lea.vmem [#allocation2], 23
    %v78 = vld [vmem:[%s77] ss:$2 sm:$0xff]
    %s79 = scalar_lea.vmem [#allocation2], 39
    %v80 = vld [vmem:[%s79] ss:$2 sm:$0xff]
    %s81 = scalar_lea.vmem [#allocation2], 55
    %v82 = vld [vmem:[%s81] ss:$2 sm:$0xff]
    %83 = vst.msk [vmem:[#allocation3] sm:$0xff] %vm22, %v76
    %84 = vst.msk [vmem:[#allocation3 + $0x8] sm:$0xff] %vm22, %v78
    %85 = vst.msk [vmem:[#allocation3 + $0x10] sm:$0xff] %vm22, %v80
    %86 = vst.msk [vmem:[#allocation3 + $0x18] sm:$0xff] %vm22, %v82
    %s87 = scalar_lea.vmem [#allocation2], 8
    %v88 = vld [vmem:[%s87] ss:$2 sm:$0xff]
    %s89 = scalar_lea.vmem [#allocation2], 24
    %v90 = vld [vmem:[%s89] ss:$2 sm:$0xff]
    %s91 = scalar_lea.vmem [#allocation2], 40
    %v92 = vld [vmem:[%s91] ss:$2 sm:$0xff]
    %s93 = scalar_lea.vmem [#allocation2], 56
    %v94 = vld [vmem:[%s93] ss:$2 sm:$0xff]
    %99 = vrot.lane.b32.xlu0 %v88, 32
    %v100 = vpop.permute.xlu0 %99
    %101 = vrot.lane.b32.xlu0 %v90, 32
    %v102 = vpop.permute.xlu0 %101
    %103 = vrot.lane.b32.xlu0 %v92, 32
    %v104 = vpop.permute.xlu0 %103
    %105 = vrot.lane.b32.xlu0 %v94, 32
    %v106 = vpop.permute.xlu0 %105
    %vm111 = vcmask 523520
    %112 = vst.msk [vmem:[#allocation3] sm:$0xff] %vm111, %v100
    %113 = vst.msk [vmem:[#allocation3 + $0x8] sm:$0xff] %vm111, %v102
    %114 = vst.msk [vmem:[#allocation3 + $0x10] sm:$0xff] %vm111, %v104
    %115 = vst.msk [vmem:[#allocation3 + $0x18] sm:$0xff] %vm111, %v106
    %s116 = scalar_lea.vmem [#allocation2], 9
    %v117 = vld [vmem:[%s116] ss:$2 sm:$0xff]
    %s118 = scalar_lea.vmem [#allocation2], 25
    %v119 = vld [vmem:[%s118] ss:$2 sm:$0xff]
    %s120 = scalar_lea.vmem [#allocation2], 41
    %v121 = vld [vmem:[%s120] ss:$2 sm:$0xff]
    %s122 = scalar_lea.vmem [#allocation2], 57
    %v123 = vld [vmem:[%s122] ss:$2 sm:$0xff]
    %128 = vrot.lane.b32.xlu0 %v117, 64
    %v129 = vpop.permute.xlu0 %128
    %130 = vrot.lane.b32.xlu0 %v119, 64
    %v131 = vpop.permute.xlu0 %130
    %132 = vrot.lane.b32.xlu0 %v121, 64
    %v133 = vpop.permute.xlu0 %132
    %134 = vrot.lane.b32.xlu0 %v123, 64
    %v135 = vpop.permute.xlu0 %134
    %vm140 = vcmask 785920
    %141 = vst.msk [vmem:[#allocation3] sm:$0xff] %vm140, %v129
    %142 = vst.msk [vmem:[#allocation3 + $0x8] sm:$0xff] %vm140, %v131
    %143 = vst.msk [vmem:[#allocation3 + $0x10] sm:$0xff] %vm140, %v133
    %144 = vst.msk [vmem:[#allocation3 + $0x18] sm:$0xff] %vm140, %v135
    %s145 = scalar_lea.vmem [#allocation2], 79
    %v146 = vld [vmem:[%s145] ss:$2 sm:$0xff]
    %s147 = scalar_lea.vmem [#allocation2], 95
    %v148 = vld [vmem:[%s147] ss:$2 sm:$0xff]
    %s149 = scalar_lea.vmem [#allocation2], 111
    %v150 = vld [vmem:[%s149] ss:$2 sm:$0xff]
    %s151 = scalar_lea.vmem [#allocation2], 127
    %v152 = vld [vmem:[%s151] ss:$2 sm:$0xff]
    %153 = vst.msk [vmem:[#allocation3 + $0x20] sm:$0xff] %vm22, %v146
    %154 = vst.msk [vmem:[#allocation3 + $0x28] sm:$0xff] %vm22, %v148
    %155 = vst.msk [vmem:[#allocation3 + $0x30] sm:$0xff] %vm22, %v150
    %156 = vst.msk [vmem:[#allocation3 + $0x38] sm:$0xff] %vm22, %v152
    %s157 = scalar_lea.vmem [#allocation2], 80
    %v158 = vld [vmem:[%s157] ss:$2 sm:$0xff]
    %s159 = scalar_lea.vmem [#allocation2], 96
    %v160 = vld [vmem:[%s159] ss:$2 sm:$0xff]
    %s161 = scalar_lea.vmem [#allocation2], 112
    %v162 = vld [vmem:[%s161] ss:$2 sm:$0xff]
    %s163 = scalar_lea.vmem [#allocation2], 128
    %v164 = vld [vmem:[%s163] ss:$2 sm:$0xff]
    %169 = vrot.lane.b32.xlu0 %v158, 32
    %v170 = vpop.permute.xlu0 %169
    %171 = vrot.lane.b32.xlu0 %v160, 32
    %v172 = vpop.permute.xlu0 %171
    %173 = vrot.lane.b32.xlu0 %v162, 32
    %v174 = vpop.permute.xlu0 %173
    %175 = vrot.lane.b32.xlu0 %v164, 32
    %v176 = vpop.permute.xlu0 %175
    %181 = vst.msk [vmem:[#allocation3 + $0x20] sm:$0xff] %vm111, %v170
    %182 = vst.msk [vmem:[#allocation3 + $0x28] sm:$0xff] %vm111, %v172
    %183 = vst.msk [vmem:[#allocation3 + $0x30] sm:$0xff] %vm111, %v174
    %184 = vst.msk [vmem:[#allocation3 + $0x38] sm:$0xff] %vm111, %v176
    %s185 = scalar_lea.vmem [#allocation2], 81
    %v186 = vld [vmem:[%s185] ss:$2 sm:$0xff]
    %s187 = scalar_lea.vmem [#allocation2], 97
    %v188 = vld [vmem:[%s187] ss:$2 sm:$0xff]
    %s189 = scalar_lea.vmem [#allocation2], 113
    %v190 = vld [vmem:[%s189] ss:$2 sm:$0xff]
    %s191 = scalar_lea.vmem [#allocation2], 129
    %v192 = vld [vmem:[%s191] ss:$2 sm:$0xff]
    %197 = vrot.lane.b32.xlu0 %v186, 64
    %v198 = vpop.permute.xlu0 %197
    %199 = vrot.lane.b32.xlu0 %v188, 64
    %v200 = vpop.permute.xlu0 %199
    %201 = vrot.lane.b32.xlu0 %v190, 64
    %v202 = vpop.permute.xlu0 %201
    %203 = vrot.lane.b32.xlu0 %v192, 64
    %v204 = vpop.permute.xlu0 %203
    %209 = vst.msk [vmem:[#allocation3 + $0x20] sm:$0xff] %vm140, %v198
    %210 = vst.msk [vmem:[#allocation3 + $0x28] sm:$0xff] %vm140, %v200
    %211 = vst.msk [vmem:[#allocation3 + $0x30] sm:$0xff] %vm140, %v202
    %212 = vst.msk [vmem:[#allocation3 + $0x38] sm:$0xff] %vm140, %v204
    %v213 = vld [vmem:[#allocation3] sm:$0xff]
    %v214 = vld [vmem:[#allocation3 + $0x8] sm:$0xff]
    %v215 = vld [vmem:[#allocation3 + $0x10] sm:$0xff]
    %v216 = vld [vmem:[#allocation3 + $0x18] sm:$0xff]
    %v217 = vld [vmem:[#allocation3 + $0x20] sm:$0xff]
    %v218 = vld [vmem:[#allocation3 + $0x28] sm:$0xff]
    %v219 = vld [vmem:[#allocation3 + $0x30] sm:$0xff]
    %v220 = vld [vmem:[#allocation3 + $0x38] sm:$0xff]
    %v221 = vpack.c.bf16 %v214, %v213
    %v222 = vpack.c.bf16 %v216, %v215
    %v223 = vpack.c.bf16 %v218, %v217
    %v224 = vpack.c.bf16 %v220, %v219
    %v225 = vld [vmem:[%s1] sm:$0xf]
    %v226 = vld [vmem:[%s1 + $0x4] sm:$0xf]
    %v227 = vld [vmem:[%s1 + $0x8] sm:$0xf]
    %v228 = vld [vmem:[%s1 + $0xc] sm:$0xf]
    %v229 = vld [vmem:[%s1 + $0x10] sm:$0xf]
    %v230 = vld [vmem:[%s1 + $0x14] sm:$0xf]
    %v231 = vld [vmem:[%s1 + $0x18] sm:$0xf]
    %v232 = vld [vmem:[%s1 + $0x1c] sm:$0xf]
    %v233 = vld [vmem:[%s1 + $0x20] sm:$0xf]
    %v234 = vld [vmem:[%s1 + $0x24] sm:$0xf]
    %v235 = vld [vmem:[%s1 + $0x28] sm:$0xf]
    %v236 = vld [vmem:[%s1 + $0x2c] sm:$0xf]
    %v249 = vunpack.c.l.b16 %v225
    %v250 = vunpack.c.l.b16 %v226
    %v251 = vunpack.c.l.b16 %v227
    %v252 = vunpack.c.l.b16 %v228
    %v253 = vunpack.c.l.b16 %v229
    %v254 = vunpack.c.l.b16 %v230
    %v255 = vunpack.c.l.b16 %v231
    %v256 = vunpack.c.l.b16 %v232
    %v257 = vunpack.c.l.b16 %v233
    %v258 = vunpack.c.l.b16 %v234
    %v259 = vunpack.c.l.b16 %v235
    %v260 = vunpack.c.l.b16 %v236
    %v261 = vpack.c.b16 %v250, %v249
    %v262 = vpack.c.b16 %v252, %v251
    %v263 = vpack.c.b16 %v254, %v253
    %v264 = vpack.c.b16 %v256, %v255
    %v265 = vpack.c.b16 %v258, %v257
    %v266 = vpack.c.b16 %v260, %v259
    %vm273 = vcmask 785408
    %v275 = vsel %vm273, %v221, 0
    %v278 = vsel %vm273, %v222, 0
    %v281 = vsel %vm273, %v223, 0
    %v284 = vsel %vm273, %v224, 0
    %286 = vmatpush.bf16.msra.mxu0 0
    %287 = vmatpush.bf16.msra.mxu0 0
    %288 = vmatpush.bf16.msra.mxu0 %v266
    %289 = vmatpush.bf16.msra.mxu0 %v265
    %290 = vmatpush.bf16.msra.mxu0 %v264
    %291 = vmatpush.bf16.msra.mxu0 %v263
    %292 = vmatpush.bf16.msra.mxu0 %v262
    %293 = vmatpush.bf16.msra.mxu0 %v261
    %294 = vmatmul.bf16.gmra.mxu0 %v275
    %v295 = vpop.f32.mrf.mxu0
    %v296 = vadd.f32 0.0, %v295
    %v297 = vpop.f32.mrf.mxu0
    %v298 = vadd.f32 0.0, %v297
    %299 = vmatmul.bf16.gmra.mxu0 %v278
    %v300 = vpop.f32.mrf.mxu0
    %v301 = vadd.f32 0.0, %v300
    %v302 = vpop.f32.mrf.mxu0
    %v303 = vadd.f32 0.0, %v302
    %304 = vmatmul.bf16.gmra.mxu0 %v281
    %v305 = vpop.f32.mrf.mxu0
    %v306 = vadd.f32 0.0, %v305
    %v307 = vpop.f32.mrf.mxu0
    %v308 = vadd.f32 0.0, %v307
    %309 = vmatmul.bf16.gmra.mxu0 %v284
    %v310 = vpop.f32.mrf.mxu0
    %v311 = vadd.f32 0.0, %v310
    %v312 = vpop.f32.mrf.mxu0
    %v313 = vadd.f32 0.0, %v312
    %314 = vdwg.mxu0
    %v315 = vld [vmem:[%s2] sm:$0x1]
    %v316 = vld [vmem:[%s3] sm:$0x1]
    %v317 = vld [vmem:[%s4] sm:$0x1]
    %v319 = vperm.slane %v315, 0
    %v321 = vadd.f32 %v296, %v319
    %v322 = vadd.f32 %v298, %v319
    %v323 = vadd.f32 %v301, %v319
    %v324 = vadd.f32 %v303, %v319
    %v325 = vsel %vm22, %v321, 0.0
    %v326 = vsel %vm22, %v322, 0.0
    %v327 = vadd.f32 %v325, %v326
    %v328 = vsel %vm22, %v323, 0.0
    %v329 = vadd.f32 %v327, %v328
    %v330 = vsel %vm22, %v324, 0.0
    %v331 = vadd.f32 %v329, %v330
    %332 = vadd.xlane.f32.xlu0 %v331
    %v333 = vpop.xlane.xlu0 %332
    %v334 = vrot.slane %v333, 4
    %v335 = vadd.f32 %v333, %v334
    %v336 = vrot.slane %v335, 2
    %v337 = vadd.f32 %v335, %v336
    %v338 = vrot.slane %v337, 1
    %v339 = vadd.f32 %v337, %v338
    %s340 = vtos %v339
    %s341 = smul.f32 %s340, 0.0009765625
    %v342 = vmul.f32 %v321, %v321
    %v343 = vmul.f32 %v322, %v322
    %v344 = vmul.f32 %v323, %v323
    %v345 = vmul.f32 %v324, %v324
    %v346 = vsel %vm22, %v342, 0.0
    %v347 = vsel %vm22, %v343, 0.0
    %v348 = vadd.f32 %v346, %v347
    %v349 = vsel %vm22, %v344, 0.0
    %v350 = vadd.f32 %v348, %v349
    %v351 = vsel %vm22, %v345, 0.0
    %v352 = vadd.f32 %v350, %v351
    %353 = vadd.xlane.f32.xlu0 %v352
    %v354 = vpop.xlane.xlu0 %353
    %v355 = vrot.slane %v354, 4
    %v356 = vadd.f32 %v354, %v355
    %v357 = vrot.slane %v356, 2
    %v358 = vadd.f32 %v356, %v357
    %v359 = vrot.slane %v358, 1
    %v360 = vadd.f32 %v358, %v359
    %s361 = vtos %v360
    %s362 = smul.f32 %s361, 0.0009765625
    %s363 = smul.f32 %s341, %s341
    %s364 = ssub.f32 %s362, %s363
    %s365 = smax.f32 %s364, 0.0
    %v366 = vstv %s341
    %v367 = vsub.f32 %v321, %v366
    %v368 = vsub.f32 %v322, %v366
    %v369 = vsub.f32 %v323, %v366
    %v370 = vsub.f32 %v324, %v366
    %s371 = sadd.f32 %s365, 1e-05
    %v372 = vstv %s371
    %v373 = vrsqrt.pop %v372
    %v374 = vmul.f32 %v373, %v372
    %v375 = vmul.f32 %v374, %v373
    %v376 = vmul.f32 0.5, %v375
    %v377 = vsub.f32 1.5, %v376
    %v378 = vmul.f32 %v373, %v377
    %vm379 = vweird.f32 %v372
    %vm380 = vweird.f32 %v373
    %vm381 = vmor %vm379, %vm380
    %v382 = vsel %vm381, %v373, %v378
    %s383 = vtos %v382
    %v384 = vstv %s383
    %v385 = vmul.f32 %v367, %v384
    %v386 = vmul.f32 %v368, %v384
    %v387 = vmul.f32 %v369, %v384
    %v388 = vmul.f32 %v370, %v384
    %v390 = vperm.slane %v316, 0
    %v392 = vmul.f32 %v385, %v390
    %v393 = vmul.f32 %v386, %v390
    %v394 = vmul.f32 %v387, %v390
    %v395 = vmul.f32 %v388, %v390
    %v397 = vperm.slane %v317, 0
    %v399 = vadd.f32 %v392, %v397
    %v400 = vadd.f32 %v393, %v397
    %v401 = vadd.f32 %v394, %v397
    %v402 = vadd.f32 %v395, %v397
    %v403 = vmul.f32 %v399, 0.5
    %v404 = vmul.f32 %v400, 0.5
    %v405 = vmul.f32 %v401, 0.5
    %v406 = vmul.f32 %v402, 0.5
    %v407 = vmul.f32 %v399, 0.70710677
    %v408 = vmul.f32 %v400, 0.70710677
    %v409 = vmul.f32 %v401, 0.70710677
    %v410 = vmul.f32 %v402, 0.70710677
    %v411 = vmul.f32 %v407, %v407
    %v412 = vmin.f32 16.0, %v411
    %v413 = vmul.f32 %v412, 2.1237322e-06
    %v414 = vadd.f32 %v413, 0.00028619796
    %v415 = vmul.f32 %v412, %v414
    %v416 = vadd.f32 %v415, 0.0036580483
    %v417 = vmul.f32 %v412, %v416
    %v418 = vadd.f32 %v417, 0.05243302
    %v419 = vmul.f32 %v412, %v418
    %v420 = vadd.f32 %v419, 0.18741608
    %v421 = vmul.f32 %v412, %v420
    %v422 = vadd.f32 %v421, 1.1283791
    %v423 = vmul.f32 %v407, %v422
    %v424 = vmul.f32 %v412, 3.8918573e-05
    %v425 = vadd.f32 %v424, 0.001143296
    %v426 = vmul.f32 %v412, %v425
    %v427 = vadd.f32 %v426, 0.014752088
    %v428 = vmul.f32 %v412, %v427
    %v429 = vadd.f32 %v428, 0.112945676
    %v430 = vmul.f32 %v412, %v429
    %v431 = vadd.f32 %v430, 0.4994258
    %v432 = vmul.f32 %v412, %v431
    %v433 = vadd.f32 %v432, 1.0
    %v434 = vrcp.pop %v433
    %v435 = vmul.f32 %v433, %v434
    %v436 = vsub.f32 1.0, %v435
    %v437 = vmul.f32 %v434, %v436
    %v438 = vadd.f32 %v434, %v437
    %vm439 = vweird.f32 %v433
    %vm440 = vweird.f32 %v434
    %vm441 = vmor %vm439, %vm440
    %v442 = vsel %vm441, %v434, %v438
    %v443 = vand.u32 2147483647, %v433
    %vm444 = vcmp.eq.f32.partialorder %v443, 8.507059e+37
    %v445 = vand.u32 %v433, 2147483648
    %v446 = vor.u32 1.1754944e-38, %v445
    %v447 = vsel %vm444, %v446, %v442
    %v448 = vmul.f32 %v423, %v447
    %v449 = vmin.f32 %v448, 1.0
    %v450 = vmax.f32 %v449, -1.0
    %v451 = vmul.f32 %v408, %v408
    %v452 = vmin.f32 16.0, %v451
    %v453 = vmul.f32 %v452, 2.1237322e-06
    %v454 = vadd.f32 %v453, 0.00028619796
    %v455 = vmul.f32 %v452, %v454
    %v456 = vadd.f32 %v455, 0.0036580483
    %v457 = vmul.f32 %v452, %v456
    %v458 = vadd.f32 %v457, 0.05243302
    %v459 = vmul.f32 %v452, %v458
    %v460 = vadd.f32 %v459, 0.18741608
    %v461 = vmul.f32 %v452, %v460
    %v462 = vadd.f32 %v461, 1.1283791
    %v463 = vmul.f32 %v408, %v462
    %v464 = vmul.f32 %v452, 3.8918573e-05
    %v465 = vadd.f32 %v464, 0.001143296
    %v466 = vmul.f32 %v452, %v465
    %v467 = vadd.f32 %v466, 0.014752088
    %v468 = vmul.f32 %v452, %v467
    %v469 = vadd.f32 %v468, 0.112945676
    %v470 = vmul.f32 %v452, %v469
    %v471 = vadd.f32 %v470, 0.4994258
    %v472 = vmul.f32 %v452, %v471
    %v473 = vadd.f32 %v472, 1.0
    %v474 = vrcp.pop %v473
    %v475 = vmul.f32 %v473, %v474
    %v476 = vsub.f32 1.0, %v475
    %v477 = vmul.f32 %v474, %v476
    %v478 = vadd.f32 %v474, %v477
    %vm479 = vweird.f32 %v473
    %vm480 = vweird.f32 %v474
    %vm481 = vmor %vm479, %vm480
    %v482 = vsel %vm481, %v474, %v478
    %v483 = vand.u32 2147483647, %v473
    %vm484 = vcmp.eq.f32.partialorder %v483, 8.507059e+37
    %v485 = vand.u32 %v473, 2147483648
    %v486 = vor.u32 1.1754944e-38, %v485
    %v487 = vsel %vm484, %v486, %v482
    %v488 = vmul.f32 %v463, %v487
    %v489 = vmin.f32 %v488, 1.0
    %v490 = vmax.f32 %v489, -1.0
    %v491 = vmul.f32 %v409, %v409
    %v492 = vmin.f32 16.0, %v491
    %v493 = vmul.f32 %v492, 2.1237322e-06
    %v494 = vadd.f32 %v493, 0.00028619796
    %v495 = vmul.f32 %v492, %v494
    %v496 = vadd.f32 %v495, 0.0036580483
    %v497 = vmul.f32 %v492, %v496
    %v498 = vadd.f32 %v497, 0.05243302
    %v499 = vmul.f32 %v492, %v498
    %v500 = vadd.f32 %v499, 0.18741608
    %v501 = vmul.f32 %v492, %v500
    %v502 = vadd.f32 %v501, 1.1283791
    %v503 = vmul.f32 %v409, %v502
    %v504 = vmul.f32 %v492, 3.8918573e-05
    %v505 = vadd.f32 %v504, 0.001143296
    %v506 = vmul.f32 %v492, %v505
    %v507 = vadd.f32 %v506, 0.014752088
    %v508 = vmul.f32 %v492, %v507
    %v509 = vadd.f32 %v508, 0.112945676
    %v510 = vmul.f32 %v492, %v509
    %v511 = vadd.f32 %v510, 0.4994258
    %v512 = vmul.f32 %v492, %v511
    %v513 = vadd.f32 %v512, 1.0
    %v514 = vrcp.pop %v513
    %v515 = vmul.f32 %v513, %v514
    %v516 = vsub.f32 1.0, %v515
    %v517 = vmul.f32 %v514, %v516
    %v518 = vadd.f32 %v514, %v517
    %vm519 = vweird.f32 %v513
    %vm520 = vweird.f32 %v514
    %vm521 = vmor %vm519, %vm520
    %v522 = vsel %vm521, %v514, %v518
    %v523 = vand.u32 2147483647, %v513
    %vm524 = vcmp.eq.f32.partialorder %v523, 8.507059e+37
    %v525 = vand.u32 %v513, 2147483648
    %v526 = vor.u32 1.1754944e-38, %v525
    %v527 = vsel %vm524, %v526, %v522
    %v528 = vmul.f32 %v503, %v527
    %v529 = vmin.f32 %v528, 1.0
    %v530 = vmax.f32 %v529, -1.0
    %v531 = vmul.f32 %v410, %v410
    %v532 = vmin.f32 16.0, %v531
    %v533 = vmul.f32 %v532, 2.1237322e-06
    %v534 = vadd.f32 %v533, 0.00028619796
    %v535 = vmul.f32 %v532, %v534
    %v536 = vadd.f32 %v535, 0.0036580483
    %v537 = vmul.f32 %v532, %v536
    %v538 = vadd.f32 %v537, 0.05243302
    %v539 = vmul.f32 %v532, %v538
    %v540 = vadd.f32 %v539, 0.18741608
    %v541 = vmul.f32 %v532, %v540
    %v542 = vadd.f32 %v541, 1.1283791
    %v543 = vmul.f32 %v410, %v542
    %v544 = vmul.f32 %v532, 3.8918573e-05
    %v545 = vadd.f32 %v544, 0.001143296
    %v546 = vmul.f32 %v532, %v545
    %v547 = vadd.f32 %v546, 0.014752088
    %v548 = vmul.f32 %v532, %v547
    %v549 = vadd.f32 %v548, 0.112945676
    %v550 = vmul.f32 %v532, %v549
    %v551 = vadd.f32 %v550, 0.4994258
    %v552 = vmul.f32 %v532, %v551
    %v553 = vadd.f32 %v552, 1.0
    %v554 = vrcp.pop %v553
    %v555 = vmul.f32 %v553, %v554
    %v556 = vsub.f32 1.0, %v555
    %v557 = vmul.f32 %v554, %v556
    %v558 = vadd.f32 %v554, %v557
    %vm559 = vweird.f32 %v553
    %vm560 = vweird.f32 %v554
    %vm561 = vmor %vm559, %vm560
    %v562 = vsel %vm561, %v554, %v558
    %v563 = vand.u32 2147483647, %v553
    %vm564 = vcmp.eq.f32.partialorder %v563, 8.507059e+37
    %v565 = vand.u32 %v553, 2147483648
    %v566 = vor.u32 1.1754944e-38, %v565
    %v567 = vsel %vm564, %v566, %v562
    %v568 = vmul.f32 %v543, %v567
    %v569 = vmin.f32 %v568, 1.0
    %v570 = vmax.f32 %v569, -1.0
    %v571 = vadd.f32 %v450, 1.0
    %v572 = vadd.f32 %v490, 1.0
    %v573 = vadd.f32 %v530, 1.0
    %v574 = vadd.f32 %v570, 1.0
    %v575 = vmul.f32 %v403, %v571
    %v576 = vmul.f32 %v404, %v572
    %v577 = vmul.f32 %v405, %v573
    %v578 = vmul.f32 %v406, %v574
    %579 = vst.msk [vmem:[#allocation2 + $0x8] sm:$0xff] %vm22, %v575
    %580 = vst.msk [vmem:[#allocation2 + $0x10] sm:$0xff] %vm22, %v576
    %581 = vst.msk [vmem:[#allocation2 + $0x18] sm:$0xff] %vm22, %v577
    %582 = vst.msk [vmem:[#allocation2 + $0x20] sm:$0xff] %vm22, %v578
    %v583 = vadd.f32 %v306, %v319
    %v584 = vadd.f32 %v308, %v319
    %v585 = vadd.f32 %v311, %v319
    %v586 = vadd.f32 %v313, %v319
    %v587 = vsel %vm22, %v583, 0.0
    %v588 = vsel %vm22, %v584, 0.0
    %v589 = vadd.f32 %v587, %v588
    %v590 = vsel %vm22, %v585, 0.0
    %v591 = vadd.f32 %v589, %v590
    %v592 = vsel %vm22, %v586, 0.0
    %v593 = vadd.f32 %v591, %v592
    %594 = vadd.xlane.f32.xlu0 %v593
    %v595 = vpop.xlane.xlu0 %594
    %v596 = vrot.slane %v595, 4
    %v597 = vadd.f32 %v595, %v596
    %v598 = vrot.slane %v597, 2
    %v599 = vadd.f32 %v597, %v598
    %v600 = vrot.slane %v599, 1
    %v601 = vadd.f32 %v599, %v600
    %s602 = vtos %v601
    %s603 = smul.f32 %s602, 0.0009765625
    %v604 = vmul.f32 %v583, %v583
    %v605 = vmul.f32 %v584, %v584
    %v606 = vmul.f32 %v585, %v585
    %v607 = vmul.f32 %v586, %v586
    %v608 = vsel %vm22, %v604, 0.0
    %v609 = vsel %vm22, %v605, 0.0
    %v610 = vadd.f32 %v608, %v609
    %v611 = vsel %vm22, %v606, 0.0
    %v612 = vadd.f32 %v610, %v611
    %v613 = vsel %vm22, %v607, 0.0
    %v614 = vadd.f32 %v612, %v613
    %615 = vadd.xlane.f32.xlu0 %v614
    %v616 = vpop.xlane.xlu0 %615
    %v617 = vrot.slane %v616, 4
    %v618 = vadd.f32 %v616, %v617
    %v619 = vrot.slane %v618, 2
    %v620 = vadd.f32 %v618, %v619
    %v621 = vrot.slane %v620, 1
    %v622 = vadd.f32 %v620, %v621
    %s623 = vtos %v622
    %s624 = smul.f32 %s623, 0.0009765625
    %s625 = smul.f32 %s603, %s603
    %s626 = ssub.f32 %s624, %s625
    %s627 = smax.f32 %s626, 0.0
    %v628 = vstv %s603
    %v629 = vsub.f32 %v583, %v628
    %v630 = vsub.f32 %v584, %v628
    %v631 = vsub.f32 %v585, %v628
    %v632 = vsub.f32 %v586, %v628
    %s633 = sadd.f32 %s627, 1e-05
    %v634 = vstv %s633
    %v635 = vrsqrt.pop %v634
    %v636 = vmul.f32 %v635, %v634
    %v637 = vmul.f32 %v636, %v635
    %v638 = vmul.f32 0.5, %v637
    %v639 = vsub.f32 1.5, %v638
    %v640 = vmul.f32 %v635, %v639
    %vm641 = vweird.f32 %v634
    %vm642 = vweird.f32 %v635
    %vm643 = vmor %vm641, %vm642
    %v644 = vsel %vm643, %v635, %v640
    %s645 = vtos %v644
    %v646 = vstv %s645
    %v647 = vmul.f32 %v629, %v646
    %v648 = vmul.f32 %v630, %v646
    %v649 = vmul.f32 %v631, %v646
    %v650 = vmul.f32 %v632, %v646
    %v651 = vmul.f32 %v647, %v390
    %v652 = vmul.f32 %v648, %v390
    %v653 = vmul.f32 %v649, %v390
    %v654 = vmul.f32 %v650, %v390
    %v655 = vadd.f32 %v651, %v397
    %v656 = vadd.f32 %v652, %v397
    %v657 = vadd.f32 %v653, %v397
    %v658 = vadd.f32 %v654, %v397
    %v659 = vmul.f32 %v655, 0.5
    %v660 = vmul.f32 %v656, 0.5
    %v661 = vmul.f32 %v657, 0.5
    %v662 = vmul.f32 %v658, 0.5
    %v663 = vmul.f32 %v655, 0.70710677
    %v664 = vmul.f32 %v656, 0.70710677
    %v665 = vmul.f32 %v657, 0.70710677
    %v666 = vmul.f32 %v658, 0.70710677
    %v667 = vmul.f32 %v663, %v663
    %v668 = vmin.f32 16.0, %v667
    %v669 = vmul.f32 %v668, 2.1237322e-06
    %v670 = vadd.f32 %v669, 0.00028619796
    %v671 = vmul.f32 %v668, %v670
    %v672 = vadd.f32 %v671, 0.0036580483
    %v673 = vmul.f32 %v668, %v672
    %v674 = vadd.f32 %v673, 0.05243302
    %v675 = vmul.f32 %v668, %v674
    %v676 = vadd.f32 %v675, 0.18741608
    %v677 = vmul.f32 %v668, %v676
    %v678 = vadd.f32 %v677, 1.1283791
    %v679 = vmul.f32 %v663, %v678
    %v680 = vmul.f32 %v668, 3.8918573e-05
    %v681 = vadd.f32 %v680, 0.001143296
    %v682 = vmul.f32 %v668, %v681
    %v683 = vadd.f32 %v682, 0.014752088
    %v684 = vmul.f32 %v668, %v683
    %v685 = vadd.f32 %v684, 0.112945676
    %v686 = vmul.f32 %v668, %v685
    %v687 = vadd.f32 %v686, 0.4994258
    %v688 = vmul.f32 %v668, %v687
    %v689 = vadd.f32 %v688, 1.0
    %v690 = vrcp.pop %v689
    %v691 = vmul.f32 %v689, %v690
    %v692 = vsub.f32 1.0, %v691
    %v693 = vmul.f32 %v690, %v692
    %v694 = vadd.f32 %v690, %v693
    %vm695 = vweird.f32 %v689
    %vm696 = vweird.f32 %v690
    %vm697 = vmor %vm695, %vm696
    %v698 = vsel %vm697, %v690, %v694
    %v699 = vand.u32 2147483647, %v689
    %vm700 = vcmp.eq.f32.partialorder %v699, 8.507059e+37
    %v701 = vand.u32 %v689, 2147483648
    %v702 = vor.u32 1.1754944e-38, %v701
    %v703 = vsel %vm700, %v702, %v698
    %v704 = vmul.f32 %v679, %v703
    %v705 = vmin.f32 %v704, 1.0
    %v706 = vmax.f32 %v705, -1.0
    %v707 = vmul.f32 %v664, %v664
    %v708 = vmin.f32 16.0, %v707
    %v709 = vmul.f32 %v708, 2.1237322e-06
    %v710 = vadd.f32 %v709, 0.00028619796
    %v711 = vmul.f32 %v708, %v710
    %v712 = vadd.f32 %v711, 0.0036580483
    %v713 = vmul.f32 %v708, %v712
    %v714 = vadd.f32 %v713, 0.05243302
    %v715 = vmul.f32 %v708, %v714
    %v716 = vadd.f32 %v715, 0.18741608
    %v717 = vmul.f32 %v708, %v716
    %v718 = vadd.f32 %v717, 1.1283791
    %v719 = vmul.f32 %v664, %v718
    %v720 = vmul.f32 %v708, 3.8918573e-05
    %v721 = vadd.f32 %v720, 0.001143296
    %v722 = vmul.f32 %v708, %v721
    %v723 = vadd.f32 %v722, 0.014752088
    %v724 = vmul.f32 %v708, %v723
    %v725 = vadd.f32 %v724, 0.112945676
    %v726 = vmul.f32 %v708, %v725
    %v727 = vadd.f32 %v726, 0.4994258
    %v728 = vmul.f32 %v708, %v727
    %v729 = vadd.f32 %v728, 1.0
    %v730 = vrcp.pop %v729
    %v731 = vmul.f32 %v729, %v730
    %v732 = vsub.f32 1.0, %v731
    %v733 = vmul.f32 %v730, %v732
    %v734 = vadd.f32 %v730, %v733
    %vm735 = vweird.f32 %v729
    %vm736 = vweird.f32 %v730
    %vm737 = vmor %vm735, %vm736
    %v738 = vsel %vm737, %v730, %v734
    %v739 = vand.u32 2147483647, %v729
    %vm740 = vcmp.eq.f32.partialorder %v739, 8.507059e+37
    %v741 = vand.u32 %v729, 2147483648
    %v742 = vor.u32 1.1754944e-38, %v741
    %v743 = vsel %vm740, %v742, %v738
    %v744 = vmul.f32 %v719, %v743
    %v745 = vmin.f32 %v744, 1.0
    %v746 = vmax.f32 %v745, -1.0
    %v747 = vmul.f32 %v665, %v665
    %v748 = vmin.f32 16.0, %v747
    %v749 = vmul.f32 %v748, 2.1237322e-06
    %v750 = vadd.f32 %v749, 0.00028619796
    %v751 = vmul.f32 %v748, %v750
    %v752 = vadd.f32 %v751, 0.0036580483
    %v753 = vmul.f32 %v748, %v752
    %v754 = vadd.f32 %v753, 0.05243302
    %v755 = vmul.f32 %v748, %v754
    %v756 = vadd.f32 %v755, 0.18741608
    %v757 = vmul.f32 %v748, %v756
    %v758 = vadd.f32 %v757, 1.1283791
    %v759 = vmul.f32 %v665, %v758
    %v760 = vmul.f32 %v748, 3.8918573e-05
    %v761 = vadd.f32 %v760, 0.001143296
    %v762 = vmul.f32 %v748, %v761
    %v763 = vadd.f32 %v762, 0.014752088
    %v764 = vmul.f32 %v748, %v763
    %v765 = vadd.f32 %v764, 0.112945676
    %v766 = vmul.f32 %v748, %v765
    %v767 = vadd.f32 %v766, 0.4994258
    %v768 = vmul.f32 %v748, %v767
    %v769 = vadd.f32 %v768, 1.0
    %v770 = vrcp.pop %v769
    %v771 = vmul.f32 %v769, %v770
    %v772 = vsub.f32 1.0, %v771
    %v773 = vmul.f32 %v770, %v772
    %v774 = vadd.f32 %v770, %v773
    %vm775 = vweird.f32 %v769
    %vm776 = vweird.f32 %v770
    %vm777 = vmor %vm775, %vm776
    %v778 = vsel %vm777, %v770, %v774
    %v779 = vand.u32 2147483647, %v769
    %vm780 = vcmp.eq.f32.partialorder %v779, 8.507059e+37
    %v781 = vand.u32 %v769, 2147483648
    %v782 = vor.u32 1.1754944e-38, %v781
    %v783 = vsel %vm780, %v782, %v778
    %v784 = vmul.f32 %v759, %v783
    %v785 = vmin.f32 %v784, 1.0
    %v786 = vmax.f32 %v785, -1.0
    %v787 = vmul.f32 %v666, %v666
    %v788 = vmin.f32 16.0, %v787
    %v789 = vmul.f32 %v788, 2.1237322e-06
    %v790 = vadd.f32 %v789, 0.00028619796
    %v791 = vmul.f32 %v788, %v790
    %v792 = vadd.f32 %v791, 0.0036580483
    %v793 = vmul.f32 %v788, %v792
    %v794 = vadd.f32 %v793, 0.05243302
    %v795 = vmul.f32 %v788, %v794
    %v796 = vadd.f32 %v795, 0.18741608
    %v797 = vmul.f32 %v788, %v796
    %v798 = vadd.f32 %v797, 1.1283791
    %v799 = vmul.f32 %v666, %v798
    %v800 = vmul.f32 %v788, 3.8918573e-05
    %v801 = vadd.f32 %v800, 0.001143296
    %v802 = vmul.f32 %v788, %v801
    %v803 = vadd.f32 %v802, 0.014752088
    %v804 = vmul.f32 %v788, %v803
    %v805 = vadd.f32 %v804, 0.112945676
    %v806 = vmul.f32 %v788, %v805
    %v807 = vadd.f32 %v806, 0.4994258
    %v808 = vmul.f32 %v788, %v807
    %v809 = vadd.f32 %v808, 1.0
    %v810 = vrcp.pop %v809
    %v811 = vmul.f32 %v809, %v810
    %v812 = vsub.f32 1.0, %v811
    %v813 = vmul.f32 %v810, %v812
    %v814 = vadd.f32 %v810, %v813
    %vm815 = vweird.f32 %v809
    %vm816 = vweird.f32 %v810
    %vm817 = vmor %vm815, %vm816
    %v818 = vsel %vm817, %v810, %v814
    %v819 = vand.u32 2147483647, %v809
    %vm820 = vcmp.eq.f32.partialorder %v819, 8.507059e+37
    %v821 = vand.u32 %v809, 2147483648
    %v822 = vor.u32 1.1754944e-38, %v821
    %v823 = vsel %vm820, %v822, %v818
    %v824 = vmul.f32 %v799, %v823
    %v825 = vmin.f32 %v824, 1.0
    %v826 = vmax.f32 %v825, -1.0
    %v827 = vadd.f32 %v706, 1.0
    %v828 = vadd.f32 %v746, 1.0
    %v829 = vadd.f32 %v786, 1.0
    %v830 = vadd.f32 %v826, 1.0
    %v831 = vmul.f32 %v659, %v827
    %v832 = vmul.f32 %v660, %v828
    %v833 = vmul.f32 %v661, %v829
    %v834 = vmul.f32 %v662, %v830
    %835 = vst.msk [vmem:[#allocation2 + $0x50] sm:$0xff] %vm22, %v831
    %836 = vst.msk [vmem:[#allocation2 + $0x58] sm:$0xff] %vm22, %v832
    %837 = vst.msk [vmem:[#allocation2 + $0x60] sm:$0xff] %vm22, %v833
    %838 = vst.msk [vmem:[#allocation2 + $0x68] sm:$0xff] %vm22, %v834
    %v839 = vld [vmem:[%s75] ss:$2 sm:$0xff]
    %v840 = vld [vmem:[%s77] ss:$2 sm:$0xff]
    %841 = vst.msk [vmem:[#allocation3] sm:$0xff] %vm22, %v839
    %842 = vst.msk [vmem:[#allocation3 + $0x8] sm:$0xff] %vm22, %v840
    %v843 = vld [vmem:[%s87] ss:$2 sm:$0xff]
    %v844 = vld [vmem:[%s89] ss:$2 sm:$0xff]
    %847 = vrot.lane.b32.xlu0 %v843, 32
    %v848 = vpop.permute.xlu0 %847
    %849 = vrot.lane.b32.xlu0 %v844, 32
    %v850 = vpop.permute.xlu0 %849
    %853 = vst.msk [vmem:[#allocation3] sm:$0xff] %vm111, %v848
    %854 = vst.msk [vmem:[#allocation3 + $0x8] sm:$0xff] %vm111, %v850
    %v855 = vld [vmem:[%s116] ss:$2 sm:$0xff]
    %v856 = vld [vmem:[%s118] ss:$2 sm:$0xff]
    %859 = vrot.lane.b32.xlu0 %v855, 64
    %v860 = vpop.permute.xlu0 %859
    %861 = vrot.lane.b32.xlu0 %v856, 64
    %v862 = vpop.permute.xlu0 %861
    %865 = vst.msk [vmem:[#allocation3] sm:$0xff] %vm140, %v860
    %866 = vst.msk [vmem:[#allocation3 + $0x8] sm:$0xff] %vm140, %v862
    %v867 = vld [vmem:[%s145] ss:$2 sm:$0xff]
    %v868 = vld [vmem:[%s147] ss:$2 sm:$0xff]
    %869 = vst.msk [vmem:[#allocation3 + $0x10] sm:$0xff] %vm22, %v867
    %870 = vst.msk [vmem:[#allocation3 + $0x18] sm:$0xff] %vm22, %v868
    %v871 = vld [vmem:[%s157] ss:$2 sm:$0xff]
    %v872 = vld [vmem:[%s159] ss:$2 sm:$0xff]
    %875 = vrot.lane.b32.xlu0 %v871, 32
    %v876 = vpop.permute.xlu0 %875
    %877 = vrot.lane.b32.xlu0 %v872, 32
    %v878 = vpop.permute.xlu0 %877
    %881 = vst.msk [vmem:[#allocation3 + $0x10] sm:$0xff] %vm111, %v876
    %882 = vst.msk [vmem:[#allocation3 + $0x18] sm:$0xff] %vm111, %v878
    %v883 = vld [vmem:[%s185] ss:$2 sm:$0xff]
    %v884 = vld [vmem:[%s187] ss:$2 sm:$0xff]
    %887 = vrot.lane.b32.xlu0 %v883, 64
    %v888 = vpop.permute.xlu0 %887
    %889 = vrot.lane.b32.xlu0 %v884, 64
    %v890 = vpop.permute.xlu0 %889
    %893 = vst.msk [vmem:[#allocation3 + $0x10] sm:$0xff] %vm140, %v888
    %894 = vst.msk [vmem:[#allocation3 + $0x18] sm:$0xff] %vm140, %v890
    %v895 = vld [vmem:[#allocation3] sm:$0xff]
    %v896 = vld [vmem:[#allocation3 + $0x8] sm:$0xff]
    %v897 = vld [vmem:[#allocation3 + $0x10] sm:$0xff]
    %v898 = vld [vmem:[#allocation3 + $0x18] sm:$0xff]
    %v899 = vpack.c.bf16 %v896, %v895
    %v900 = vpack.c.bf16 %v898, %v897
    %s901 = scalar_lea.vmem %s1, 48
    %v902 = vld [vmem:[%s901] sm:$0xf]
    %v903 = vld [vmem:[%s901 + $0x4] sm:$0xf]
    %v904 = vld [vmem:[%s901 + $0x8] sm:$0xf]
    %v905 = vld [vmem:[%s901 + $0xc] sm:$0xf]
    %v906 = vld [vmem:[%s901 + $0x10] sm:$0xf]
    %v907 = vld [vmem:[%s901 + $0x14] sm:$0xf]
    %v908 = vld [vmem:[%s901 + $0x18] sm:$0xf]
    %v909 = vld [vmem:[%s901 + $0x1c] sm:$0xf]
    %v910 = vld [vmem:[%s901 + $0x20] sm:$0xf]
    %v911 = vld [vmem:[%s901 + $0x24] sm:$0xf]
    %v912 = vld [vmem:[%s901 + $0x28] sm:$0xf]
    %v913 = vld [vmem:[%s901 + $0x2c] sm:$0xf]
    %v926 = vunpack.c.l.b16 %v902
    %v927 = vunpack.c.l.b16 %v903
    %v928 = vunpack.c.l.b16 %v904
    %v929 = vunpack.c.l.b16 %v905
    %v930 = vunpack.c.l.b16 %v906
    %v931 = vunpack.c.l.b16 %v907
    %v932 = vunpack.c.l.b16 %v908
    %v933 = vunpack.c.l.b16 %v909
    %v934 = vunpack.c.l.b16 %v910
    %v935 = vunpack.c.l.b16 %v911
    %v936 = vunpack.c.l.b16 %v912
    %v937 = vunpack.c.l.b16 %v913
    %v938 = vpack.c.b16 %v927, %v926
    %v939 = vpack.c.b16 %v929, %v928
    %v940 = vpack.c.b16 %v931, %v930
    %v941 = vpack.c.b16 %v933, %v932
    %v942 = vpack.c.b16 %v935, %v934
    %v943 = vpack.c.b16 %v937, %v936
    %v951 = vsel %vm273, %v899, 0
    %v954 = vsel %vm273, %v900, 0
    %956 = vmatpush.bf16.msra.mxu0 0
    %957 = vmatpush.bf16.msra.mxu0 0
    %958 = vmatpush.bf16.msra.mxu0 %v943
    %959 = vmatpush.bf16.msra.mxu0 %v942
    %960 = vmatpush.bf16.msra.mxu0 %v941
    %961 = vmatpush.bf16.msra.mxu0 %v940
    %962 = vmatpush.bf16.msra.mxu0 %v939
    %963 = vmatpush.bf16.msra.mxu0 %v938
    %964 = vmatmul.bf16.gmra.mxu0 %v951
    %v965 = vpop.f32.mrf.mxu0
    %v966 = vadd.f32 0.0, %v965
    %v967 = vpop.f32.mrf.mxu0
    %v968 = vadd.f32 0.0, %v967
    %969 = vmatmul.bf16.gmra.mxu0 %v954
    %v970 = vpop.f32.mrf.mxu0
    %v971 = vadd.f32 0.0, %v970
    %v972 = vpop.f32.mrf.mxu0
    %v973 = vadd.f32 0.0, %v972
    %974 = vdwg.mxu0
    %s975 = scalar_lea.vmem %s2, 1
    %v976 = vld [vmem:[%s975] sm:$0x1]
    %s977 = scalar_lea.vmem %s3, 1
    %v978 = vld [vmem:[%s977] sm:$0x1]
    %s979 = scalar_lea.vmem %s4, 1
    %v980 = vld [vmem:[%s979] sm:$0x1]
    %v982 = vperm.slane %v976, 0
    %v984 = vadd.f32 %v966, %v982
    %v985 = vadd.f32 %v968, %v982
    %v986 = vsel %vm22, %v984, 0.0
    %v987 = vsel %vm22, %v985, 0.0
    %v988 = vadd.f32 %v986, %v987
    %989 = vadd.xlane.f32.xlu0 %v988
    %v990 = vpop.xlane.xlu0 %989
    %v991 = vrot.slane %v990, 4
    %v992 = vadd.f32 %v990, %v991
    %v993 = vrot.slane %v992, 2
    %v994 = vadd.f32 %v992, %v993
    %v995 = vrot.slane %v994, 1
    %v996 = vadd.f32 %v994, %v995
    %s997 = vtos %v996
    %s998 = smul.f32 %s997, 0.001953125
    %v999 = vmul.f32 %v984, %v984
    %v1000 = vmul.f32 %v985, %v985
    %v1001 = vsel %vm22, %v999, 0.0
    %v1002 = vsel %vm22, %v1000, 0.0
    %v1003 = vadd.f32 %v1001, %v1002
    %1004 = vadd.xlane.f32.xlu0 %v1003
    %v1005 = vpop.xlane.xlu0 %1004
    %v1006 = vrot.slane %v1005, 4
    %v1007 = vadd.f32 %v1005, %v1006
    %v1008 = vrot.slane %v1007, 2
    %v1009 = vadd.f32 %v1007, %v1008
    %v1010 = vrot.slane %v1009, 1
    %v1011 = vadd.f32 %v1009, %v1010
    %s1012 = vtos %v1011
    %s1013 = smul.f32 %s1012, 0.001953125
    %s1014 = smul.f32 %s998, %s998
    %s1015 = ssub.f32 %s1013, %s1014
    %s1016 = smax.f32 %s1015, 0.0
    %v1017 = vstv %s998
    %v1018 = vsub.f32 %v984, %v1017
    %v1019 = vsub.f32 %v985, %v1017
    %s1020 = sadd.f32 %s1016, 1e-05
    %v1021 = vstv %s1020
    %v1022 = vrsqrt.pop %v1021
    %v1023 = vmul.f32 %v1022, %v1021
    %v1024 = vmul.f32 %v1023, %v1022
    %v1025 = vmul.f32 0.5, %v1024
    %v1026 = vsub.f32 1.5, %v1025
    %v1027 = vmul.f32 %v1022, %v1026
    %vm1028 = vweird.f32 %v1021
    %vm1029 = vweird.f32 %v1022
    %vm1030 = vmor %vm1028, %vm1029
    %v1031 = vsel %vm1030, %v1022, %v1027
    %s1032 = vtos %v1031
    %v1033 = vstv %s1032
    %v1034 = vmul.f32 %v1018, %v1033
    %v1035 = vmul.f32 %v1019, %v1033
    %v1037 = vperm.slane %v978, 0
    %v1039 = vmul.f32 %v1034, %v1037
    %v1040 = vmul.f32 %v1035, %v1037
    %v1042 = vperm.slane %v980, 0
    %v1044 = vadd.f32 %v1039, %v1042
    %v1045 = vadd.f32 %v1040, %v1042
    %v1046 = vmul.f32 %v1044, 0.5
    %v1047 = vmul.f32 %v1045, 0.5
    %v1048 = vmul.f32 %v1044, 0.70710677
    %v1049 = vmul.f32 %v1045, 0.70710677
    %v1050 = vmul.f32 %v1048, %v1048
    %v1051 = vmin.f32 16.0, %v1050
    %v1052 = vmul.f32 %v1051, 2.1237322e-06
    %v1053 = vadd.f32 %v1052, 0.00028619796
    %v1054 = vmul.f32 %v1051, %v1053
    %v1055 = vadd.f32 %v1054, 0.0036580483
    %v1056 = vmul.f32 %v1051, %v1055
    %v1057 = vadd.f32 %v1056, 0.05243302
    %v1058 = vmul.f32 %v1051, %v1057
    %v1059 = vadd.f32 %v1058, 0.18741608
    %v1060 = vmul.f32 %v1051, %v1059
    %v1061 = vadd.f32 %v1060, 1.1283791
    %v1062 = vmul.f32 %v1048, %v1061
    %v1063 = vmul.f32 %v1051, 3.8918573e-05
    %v1064 = vadd.f32 %v1063, 0.001143296
    %v1065 = vmul.f32 %v1051, %v1064
    %v1066 = vadd.f32 %v1065, 0.014752088
    %v1067 = vmul.f32 %v1051, %v1066
    %v1068 = vadd.f32 %v1067, 0.112945676
    %v1069 = vmul.f32 %v1051, %v1068
    %v1070 = vadd.f32 %v1069, 0.4994258
    %v1071 = vmul.f32 %v1051, %v1070
    %v1072 = vadd.f32 %v1071, 1.0
    %v1073 = vrcp.pop %v1072
    %v1074 = vmul.f32 %v1072, %v1073
    %v1075 = vsub.f32 1.0, %v1074
    %v1076 = vmul.f32 %v1073, %v1075
    %v1077 = vadd.f32 %v1073, %v1076
    %vm1078 = vweird.f32 %v1072
    %vm1079 = vweird.f32 %v1073
    %vm1080 = vmor %vm1078, %vm1079
    %v1081 = vsel %vm1080, %v1073, %v1077
    %v1082 = vand.u32 2147483647, %v1072
    %vm1083 = vcmp.eq.f32.partialorder %v1082, 8.507059e+37
    %v1084 = vand.u32 %v1072, 2147483648
    %v1085 = vor.u32 1.1754944e-38, %v1084
    %v1086 = vsel %vm1083, %v1085, %v1081
    %v1087 = vmul.f32 %v1062, %v1086
    %v1088 = vmin.f32 %v1087, 1.0
    %v1089 = vmax.f32 %v1088, -1.0
    %v1090 = vmul.f32 %v1049, %v1049
    %v1091 = vmin.f32 16.0, %v1090
    %v1092 = vmul.f32 %v1091, 2.1237322e-06
    %v1093 = vadd.f32 %v1092, 0.00028619796
    %v1094 = vmul.f32 %v1091, %v1093
    %v1095 = vadd.f32 %v1094, 0.0036580483
    %v1096 = vmul.f32 %v1091, %v1095
    %v1097 = vadd.f32 %v1096, 0.05243302
    %v1098 = vmul.f32 %v1091, %v1097
    %v1099 = vadd.f32 %v1098, 0.18741608
    %v1100 = vmul.f32 %v1091, %v1099
    %v1101 = vadd.f32 %v1100, 1.1283791
    %v1102 = vmul.f32 %v1049, %v1101
    %v1103 = vmul.f32 %v1091, 3.8918573e-05
    %v1104 = vadd.f32 %v1103, 0.001143296
    %v1105 = vmul.f32 %v1091, %v1104
    %v1106 = vadd.f32 %v1105, 0.014752088
    %v1107 = vmul.f32 %v1091, %v1106
    %v1108 = vadd.f32 %v1107, 0.112945676
    %v1109 = vmul.f32 %v1091, %v1108
    %v1110 = vadd.f32 %v1109, 0.4994258
    %v1111 = vmul.f32 %v1091, %v1110
    %v1112 = vadd.f32 %v1111, 1.0
    %v1113 = vrcp.pop %v1112
    %v1114 = vmul.f32 %v1112, %v1113
    %v1115 = vsub.f32 1.0, %v1114
    %v1116 = vmul.f32 %v1113, %v1115
    %v1117 = vadd.f32 %v1113, %v1116
    %vm1118 = vweird.f32 %v1112
    %vm1119 = vweird.f32 %v1113
    %vm1120 = vmor %vm1118, %vm1119
    %v1121 = vsel %vm1120, %v1113, %v1117
    %v1122 = vand.u32 2147483647, %v1112
    %vm1123 = vcmp.eq.f32.partialorder %v1122, 8.507059e+37
    %v1124 = vand.u32 %v1112, 2147483648
    %v1125 = vor.u32 1.1754944e-38, %v1124
    %v1126 = vsel %vm1123, %v1125, %v1121
    %v1127 = vmul.f32 %v1102, %v1126
    %v1128 = vmin.f32 %v1127, 1.0
    %v1129 = vmax.f32 %v1128, -1.0
    %v1130 = vadd.f32 %v1089, 1.0
    %v1131 = vadd.f32 %v1129, 1.0
    %v1132 = vmul.f32 %v1046, %v1130
    %v1133 = vmul.f32 %v1047, %v1131
    %1134 = vst.msk [vmem:[#allocation2 + $0x8] sm:$0xff] %vm22, %v1132
    %1135 = vst.msk [vmem:[#allocation2 + $0x10] sm:$0xff] %vm22, %v1133
    %v1136 = vadd.f32 %v971, %v982
    %v1137 = vadd.f32 %v973, %v982
    %v1138 = vsel %vm22, %v1136, 0.0
    %v1139 = vsel %vm22, %v1137, 0.0
    %v1140 = vadd.f32 %v1138, %v1139
    %1141 = vadd.xlane.f32.xlu0 %v1140
    %v1142 = vpop.xlane.xlu0 %1141
    %v1143 = vrot.slane %v1142, 4
    %v1144 = vadd.f32 %v1142, %v1143
    %v1145 = vrot.slane %v1144, 2
    %v1146 = vadd.f32 %v1144, %v1145
    %v1147 = vrot.slane %v1146, 1
    %v1148 = vadd.f32 %v1146, %v1147
    %s1149 = vtos %v1148
    %s1150 = smul.f32 %s1149, 0.001953125
    %v1151 = vmul.f32 %v1136, %v1136
    %v1152 = vmul.f32 %v1137, %v1137
    %v1153 = vsel %vm22, %v1151, 0.0
    %v1154 = vsel %vm22, %v1152, 0.0
    %v1155 = vadd.f32 %v1153, %v1154
    %1156 = vadd.xlane.f32.xlu0 %v1155
    %v1157 = vpop.xlane.xlu0 %1156
    %v1158 = vrot.slane %v1157, 4
    %v1159 = vadd.f32 %v1157, %v1158
    %v1160 = vrot.slane %v1159, 2
    %v1161 = vadd.f32 %v1159, %v1160
    %v1162 = vrot.slane %v1161, 1
    %v1163 = vadd.f32 %v1161, %v1162
    %s1164 = vtos %v1163
    %s1165 = smul.f32 %s1164, 0.001953125
    %s1166 = smul.f32 %s1150, %s1150
    %s1167 = ssub.f32 %s1165, %s1166
    %s1168 = smax.f32 %s1167, 0.0
    %v1169 = vstv %s1150
    %v1170 = vsub.f32 %v1136, %v1169
    %v1171 = vsub.f32 %v1137, %v1169
    %s1172 = sadd.f32 %s1168, 1e-05
    %v1173 = vstv %s1172
    %v1174 = vrsqrt.pop %v1173
    %v1175 = vmul.f32 %v1174, %v1173
    %v1176 = vmul.f32 %v1175, %v1174
    %v1177 = vmul.f32 0.5, %v1176
    %v1178 = vsub.f32 1.5, %v1177
    %v1179 = vmul.f32 %v1174, %v1178
    %vm1180 = vweird.f32 %v1173
    %vm1181 = vweird.f32 %v1174
    %vm1182 = vmor %vm1180, %vm1181
    %v1183 = vsel %vm1182, %v1174, %v1179
    %s1184 = vtos %v1183
    %v1185 = vstv %s1184
    %v1186 = vmul.f32 %v1170, %v1185
    %v1187 = vmul.f32 %v1171, %v1185
    %v1188 = vmul.f32 %v1186, %v1037
    %v1189 = vmul.f32 %v1187, %v1037
    %v1190 = vadd.f32 %v1188, %v1042
    %v1191 = vadd.f32 %v1189, %v1042
    %v1192 = vmul.f32 %v1190, 0.5
    %v1193 = vmul.f32 %v1191, 0.5
    %v1194 = vmul.f32 %v1190, 0.70710677
    %v1195 = vmul.f32 %v1191, 0.70710677
    %v1196 = vmul.f32 %v1194, %v1194
    %v1197 = vmin.f32 16.0, %v1196
    %v1198 = vmul.f32 %v1197, 2.1237322e-06
    %v1199 = vadd.f32 %v1198, 0.00028619796
    %v1200 = vmul.f32 %v1197, %v1199
    %v1201 = vadd.f32 %v1200, 0.0036580483
    %v1202 = vmul.f32 %v1197, %v1201
    %v1203 = vadd.f32 %v1202, 0.05243302
    %v1204 = vmul.f32 %v1197, %v1203
    %v1205 = vadd.f32 %v1204, 0.18741608
    %v1206 = vmul.f32 %v1197, %v1205
    %v1207 = vadd.f32 %v1206, 1.1283791
    %v1208 = vmul.f32 %v1194, %v1207
    %v1209 = vmul.f32 %v1197, 3.8918573e-05
    %v1210 = vadd.f32 %v1209, 0.001143296
    %v1211 = vmul.f32 %v1197, %v1210
    %v1212 = vadd.f32 %v1211, 0.014752088
    %v1213 = vmul.f32 %v1197, %v1212
    %v1214 = vadd.f32 %v1213, 0.112945676
    %v1215 = vmul.f32 %v1197, %v1214
    %v1216 = vadd.f32 %v1215, 0.4994258
    %v1217 = vmul.f32 %v1197, %v1216
    %v1218 = vadd.f32 %v1217, 1.0
    %v1219 = vrcp.pop %v1218
    %v1220 = vmul.f32 %v1218, %v1219
    %v1221 = vsub.f32 1.0, %v1220
    %v1222 = vmul.f32 %v1219, %v1221
    %v1223 = vadd.f32 %v1219, %v1222
    %vm1224 = vweird.f32 %v1218
    %vm1225 = vweird.f32 %v1219
    %vm1226 = vmor %vm1224, %vm1225
    %v1227 = vsel %vm1226, %v1219, %v1223
    %v1228 = vand.u32 2147483647, %v1218
    %vm1229 = vcmp.eq.f32.partialorder %v1228, 8.507059e+37
    %v1230 = vand.u32 %v1218, 2147483648
    %v1231 = vor.u32 1.1754944e-38, %v1230
    %v1232 = vsel %vm1229, %v1231, %v1227
    %v1233 = vmul.f32 %v1208, %v1232
    %v1234 = vmin.f32 %v1233, 1.0
    %v1235 = vmax.f32 %v1234, -1.0
    %v1236 = vmul.f32 %v1195, %v1195
    %v1237 = vmin.f32 16.0, %v1236
    %v1238 = vmul.f32 %v1237, 2.1237322e-06
    %v1239 = vadd.f32 %v1238, 0.00028619796
    %v1240 = vmul.f32 %v1237, %v1239
    %v1241 = vadd.f32 %v1240, 0.0036580483
    %v1242 = vmul.f32 %v1237, %v1241
    %v1243 = vadd.f32 %v1242, 0.05243302
    %v1244 = vmul.f32 %v1237, %v1243
    %v1245 = vadd.f32 %v1244, 0.18741608
    %v1246 = vmul.f32 %v1237, %v1245
    %v1247 = vadd.f32 %v1246, 1.1283791
    %v1248 = vmul.f32 %v1195, %v1247
    %v1249 = vmul.f32 %v1237, 3.8918573e-05
    %v1250 = vadd.f32 %v1249, 0.001143296
    %v1251 = vmul.f32 %v1237, %v1250
    %v1252 = vadd.f32 %v1251, 0.014752088
    %v1253 = vmul.f32 %v1237, %v1252
    %v1254 = vadd.f32 %v1253, 0.112945676
    %v1255 = vmul.f32 %v1237, %v1254
    %v1256 = vadd.f32 %v1255, 0.4994258
    %v1257 = vmul.f32 %v1237, %v1256
    %v1258 = vadd.f32 %v1257, 1.0
    %v1259 = vrcp.pop %v1258
    %v1260 = vmul.f32 %v1258, %v1259
    %v1261 = vsub.f32 1.0, %v1260
    %v1262 = vmul.f32 %v1259, %v1261
    %v1263 = vadd.f32 %v1259, %v1262
    %vm1264 = vweird.f32 %v1258
    %vm1265 = vweird.f32 %v1259
    %vm1266 = vmor %vm1264, %vm1265
    %v1267 = vsel %vm1266, %v1259, %v1263
    %v1268 = vand.u32 2147483647, %v1258
    %vm1269 = vcmp.eq.f32.partialorder %v1268, 8.507059e+37
    %v1270 = vand.u32 %v1258, 2147483648
    %v1271 = vor.u32 1.1754944e-38, %v1270
    %v1272 = vsel %vm1269, %v1271, %v1267
    %v1273 = vmul.f32 %v1248, %v1272
    %v1274 = vmin.f32 %v1273, 1.0
    %v1275 = vmax.f32 %v1274, -1.0
    %v1276 = vadd.f32 %v1235, 1.0
    %v1277 = vadd.f32 %v1275, 1.0
    %v1278 = vmul.f32 %v1192, %v1276
    %v1279 = vmul.f32 %v1193, %v1277
    %1280 = vst.msk [vmem:[#allocation2 + $0x50] sm:$0xff] %vm22, %v1278
    %1281 = vst.msk [vmem:[#allocation2 + $0x58] sm:$0xff] %vm22, %v1279
    %v1282 = vld [vmem:[%s75] ss:$2 sm:$0xff]
    %1283 = vst.msk [vmem:[#allocation3] sm:$0xff] %vm22, %v1282
    %v1284 = vld [vmem:[%s87] ss:$2 sm:$0xff]
    %1286 = vrot.lane.b32.xlu0 %v1284, 32
    %v1287 = vpop.permute.xlu0 %1286
    %1289 = vst.msk [vmem:[#allocation3] sm:$0xff] %vm111, %v1287
    %v1290 = vld [vmem:[%s116] ss:$2 sm:$0xff]
    %1292 = vrot.lane.b32.xlu0 %v1290, 64
    %v1293 = vpop.permute.xlu0 %1292
    %1295 = vst.msk [vmem:[#allocation3] sm:$0xff] %vm140, %v1293
    %v1296 = vld [vmem:[%s145] ss:$2 sm:$0xff]
    %1297 = vst.msk [vmem:[#allocation3 + $0x8] sm:$0xff] %vm22, %v1296
    %v1298 = vld [vmem:[%s157] ss:$2 sm:$0xff]
    %1300 = vrot.lane.b32.xlu0 %v1298, 32
    %v1301 = vpop.permute.xlu0 %1300
    %1303 = vst.msk [vmem:[#allocation3 + $0x8] sm:$0xff] %vm111, %v1301
    %v1304 = vld [vmem:[%s185] ss:$2 sm:$0xff]
    %1306 = vrot.lane.b32.xlu0 %v1304, 64
    %v1307 = vpop.permute.xlu0 %1306
    %1309 = vst.msk [vmem:[#allocation3 + $0x8] sm:$0xff] %vm140, %v1307
    %v1310 = vld [vmem:[#allocation3] sm:$0xff]
    %v1311 = vld [vmem:[#allocation3 + $0x8] sm:$0xff]
    %v1312 = vpack.c.bf16 %v1311, %v1310
    %s1313 = scalar_lea.vmem %s1, 96
    %v1314 = vld [vmem:[%s1313] sm:$0xf]
    %v1315 = vld [vmem:[%s1313 + $0x4] sm:$0xf]
    %v1316 = vld [vmem:[%s1313 + $0x8] sm:$0xf]
    %v1317 = vld [vmem:[%s1313 + $0xc] sm:$0xf]
    %v1318 = vld [vmem:[%s1313 + $0x10] sm:$0xf]
    %v1319 = vld [vmem:[%s1313 + $0x14] sm:$0xf]
    %v1320 = vld [vmem:[%s1313 + $0x18] sm:$0xf]
    %v1321 = vld [vmem:[%s1313 + $0x1c] sm:$0xf]
    %v1322 = vld [vmem:[%s1313 + $0x20] sm:$0xf]
    %v1323 = vld [vmem:[%s1313 + $0x24] sm:$0xf]
    %v1324 = vld [vmem:[%s1313 + $0x28] sm:$0xf]
    %v1325 = vld [vmem:[%s1313 + $0x2c] sm:$0xf]
    %v1338 = vunpack.c.l.b16 %v1314
    %v1339 = vunpack.c.l.b16 %v1315
    %v1340 = vunpack.c.l.b16 %v1316
    %v1341 = vunpack.c.l.b16 %v1317
    %v1342 = vunpack.c.l.b16 %v1318
    %v1343 = vunpack.c.l.b16 %v1319
    %v1344 = vunpack.c.l.b16 %v1320
    %v1345 = vunpack.c.l.b16 %v1321
    %v1346 = vunpack.c.l.b16 %v1322
    %v1347 = vunpack.c.l.b16 %v1323
    %v1348 = vunpack.c.l.b16 %v1324
    %v1349 = vunpack.c.l.b16 %v1325
    %v1350 = vpack.c.b16 %v1339, %v1338
    %v1351 = vpack.c.b16 %v1341, %v1340
    %v1352 = vpack.c.b16 %v1343, %v1342
    %v1353 = vpack.c.b16 %v1345, %v1344
    %v1354 = vpack.c.b16 %v1347, %v1346
    %v1355 = vpack.c.b16 %v1349, %v1348
    %v1363 = vsel %vm273, %v1312, 0
    %1365 = vmatpush.bf16.msra.mxu0 0
    %1366 = vmatpush.bf16.msra.mxu0 0
    %1367 = vmatpush.bf16.msra.mxu0 %v1355
    %1368 = vmatpush.bf16.msra.mxu0 %v1354
    %1369 = vmatpush.bf16.msra.mxu0 %v1353
    %1370 = vmatpush.bf16.msra.mxu0 %v1352
    %1371 = vmatpush.bf16.msra.mxu0 %v1351
    %1372 = vmatpush.bf16.msra.mxu0 %v1350
    %1373 = vmatmul.bf16.gmra.mxu0 %v1363
    %v1374 = vpop.f32.mrf.mxu0
    %v1375 = vadd.f32 0.0, %v1374
    %v1376 = vpop.f32.mrf.mxu0
    %v1377 = vadd.f32 0.0, %v1376
    %1378 = vdwg.mxu0
    %s1379 = scalar_lea.vmem %s2, 2
    %v1380 = vld [vmem:[%s1379] sm:$0x1]
    %s1381 = scalar_lea.vmem %s3, 2
    %v1382 = vld [vmem:[%s1381] sm:$0x1]
    %s1383 = scalar_lea.vmem %s4, 2
    %v1384 = vld [vmem:[%s1383] sm:$0x1]
    %v1386 = vperm.slane %v1380, 0
    %v1388 = vadd.f32 %v1375, %v1386
    %v1389 = vsel %vm22, %v1388, 0.0
    %1390 = vadd.xlane.f32.xlu0 %v1389
    %v1391 = vpop.xlane.xlu0 %1390
    %v1392 = vrot.slane %v1391, 4
    %v1393 = vadd.f32 %v1391, %v1392
    %v1394 = vrot.slane %v1393, 2
    %v1395 = vadd.f32 %v1393, %v1394
    %v1396 = vrot.slane %v1395, 1
    %v1397 = vadd.f32 %v1395, %v1396
    %s1398 = vtos %v1397
    %s1399 = smul.f32 %s1398, 0.00390625
    %v1400 = vmul.f32 %v1388, %v1388
    %v1401 = vsel %vm22, %v1400, 0.0
    %1402 = vadd.xlane.f32.xlu0 %v1401
    %v1403 = vpop.xlane.xlu0 %1402
    %v1404 = vrot.slane %v1403, 4
    %v1405 = vadd.f32 %v1403, %v1404
    %v1406 = vrot.slane %v1405, 2
    %v1407 = vadd.f32 %v1405, %v1406
    %v1408 = vrot.slane %v1407, 1
    %v1409 = vadd.f32 %v1407, %v1408
    %s1410 = vtos %v1409
    %s1411 = smul.f32 %s1410, 0.00390625
    %s1412 = smul.f32 %s1399, %s1399
    %s1413 = ssub.f32 %s1411, %s1412
    %s1414 = smax.f32 %s1413, 0.0
    %v1415 = vstv %s1399
    %v1416 = vsub.f32 %v1388, %v1415
    %s1417 = sadd.f32 %s1414, 1e-05
    %v1418 = vstv %s1417
    %v1419 = vrsqrt.pop %v1418
    %v1420 = vmul.f32 %v1419, %v1418
    %v1421 = vmul.f32 %v1420, %v1419
    %v1422 = vmul.f32 0.5, %v1421
    %v1423 = vsub.f32 1.5, %v1422
    %v1424 = vmul.f32 %v1419, %v1423
    %vm1425 = vweird.f32 %v1418
    %vm1426 = vweird.f32 %v1419
    %vm1427 = vmor %vm1425, %vm1426
    %v1428 = vsel %vm1427, %v1419, %v1424
    %s1429 = vtos %v1428
    %v1430 = vstv %s1429
    %v1431 = vmul.f32 %v1416, %v1430
    %v1433 = vperm.slane %v1382, 0
    %v1435 = vmul.f32 %v1431, %v1433
    %v1437 = vperm.slane %v1384, 0
    %v1439 = vadd.f32 %v1435, %v1437
    %v1440 = vmul.f32 %v1439, 0.5
    %v1441 = vmul.f32 %v1439, 0.70710677
    %v1442 = vmul.f32 %v1441, %v1441
    %v1443 = vmin.f32 16.0, %v1442
    %v1444 = vmul.f32 %v1443, 2.1237322e-06
    %v1445 = vadd.f32 %v1444, 0.00028619796
    %v1446 = vmul.f32 %v1443, %v1445
    %v1447 = vadd.f32 %v1446, 0.0036580483
    %v1448 = vmul.f32 %v1443, %v1447
    %v1449 = vadd.f32 %v1448, 0.05243302
    %v1450 = vmul.f32 %v1443, %v1449
    %v1451 = vadd.f32 %v1450, 0.18741608
    %v1452 = vmul.f32 %v1443, %v1451
    %v1453 = vadd.f32 %v1452, 1.1283791
    %v1454 = vmul.f32 %v1441, %v1453
    %v1455 = vmul.f32 %v1443, 3.8918573e-05
    %v1456 = vadd.f32 %v1455, 0.001143296
    %v1457 = vmul.f32 %v1443, %v1456
    %v1458 = vadd.f32 %v1457, 0.014752088
    %v1459 = vmul.f32 %v1443, %v1458
    %v1460 = vadd.f32 %v1459, 0.112945676
    %v1461 = vmul.f32 %v1443, %v1460
    %v1462 = vadd.f32 %v1461, 0.4994258
    %v1463 = vmul.f32 %v1443, %v1462
    %v1464 = vadd.f32 %v1463, 1.0
    %v1465 = vrcp.pop %v1464
    %v1466 = vmul.f32 %v1464, %v1465
    %v1467 = vsub.f32 1.0, %v1466
    %v1468 = vmul.f32 %v1465, %v1467
    %v1469 = vadd.f32 %v1465, %v1468
    %vm1470 = vweird.f32 %v1464
    %vm1471 = vweird.f32 %v1465
    %vm1472 = vmor %vm1470, %vm1471
    %v1473 = vsel %vm1472, %v1465, %v1469
    %v1474 = vand.u32 2147483647, %v1464
    %vm1475 = vcmp.eq.f32.partialorder %v1474, 8.507059e+37
    %v1476 = vand.u32 %v1464, 2147483648
    %v1477 = vor.u32 1.1754944e-38, %v1476
    %v1478 = vsel %vm1475, %v1477, %v1473
    %v1479 = vmul.f32 %v1454, %v1478
    %v1480 = vmin.f32 %v1479, 1.0
    %v1481 = vmax.f32 %v1480, -1.0
    %v1482 = vadd.f32 %v1481, 1.0
    %v1483 = vmul.f32 %v1440, %v1482
    %1484 = vst.msk [vmem:[#allocation2 + $0x8] sm:$0xff] %vm22, %v1483
    %v1485 = vadd.f32 %v1377, %v1386
    %v1486 = vsel %vm22, %v1485, 0.0
    %1487 = vadd.xlane.f32.xlu0 %v1486
    %v1488 = vpop.xlane.xlu0 %1487
    %v1489 = vrot.slane %v1488, 4
    %v1490 = vadd.f32 %v1488, %v1489
    %v1491 = vrot.slane %v1490, 2
    %v1492 = vadd.f32 %v1490, %v1491
    %v1493 = vrot.slane %v1492, 1
    %v1494 = vadd.f32 %v1492, %v1493
    %s1495 = vtos %v1494
    %s1496 = smul.f32 %s1495, 0.00390625
    %v1497 = vmul.f32 %v1485, %v1485
    %v1498 = vsel %vm22, %v1497, 0.0
    %1499 = vadd.xlane.f32.xlu0 %v1498
    %v1500 = vpop.xlane.xlu0 %1499
    %v1501 = vrot.slane %v1500, 4
    %v1502 = vadd.f32 %v1500, %v1501
    %v1503 = vrot.slane %v1502, 2
    %v1504 = vadd.f32 %v1502, %v1503
    %v1505 = vrot.slane %v1504, 1
    %v1506 = vadd.f32 %v1504, %v1505
    %s1507 = vtos %v1506
    %s1508 = smul.f32 %s1507, 0.00390625
    %s1509 = smul.f32 %s1496, %s1496
    %s1510 = ssub.f32 %s1508, %s1509
    %s1511 = smax.f32 %s1510, 0.0
    %v1512 = vstv %s1496
    %v1513 = vsub.f32 %v1485, %v1512
    %s1514 = sadd.f32 %s1511, 1e-05
    %v1515 = vstv %s1514
    %v1516 = vrsqrt.pop %v1515
    %v1517 = vmul.f32 %v1516, %v1515
    %v1518 = vmul.f32 %v1517, %v1516
    %v1519 = vmul.f32 0.5, %v1518
    %v1520 = vsub.f32 1.5, %v1519
    %v1521 = vmul.f32 %v1516, %v1520
    %vm1522 = vweird.f32 %v1515
    %vm1523 = vweird.f32 %v1516
    %vm1524 = vmor %vm1522, %vm1523
    %v1525 = vsel %vm1524, %v1516, %v1521
    %s1526 = vtos %v1525
    %v1527 = vstv %s1526
    %v1528 = vmul.f32 %v1513, %v1527
    %v1529 = vmul.f32 %v1528, %v1433
    %v1530 = vadd.f32 %v1529, %v1437
    %v1531 = vmul.f32 %v1530, 0.5
    %v1532 = vmul.f32 %v1530, 0.70710677
    %v1533 = vmul.f32 %v1532, %v1532
    %v1534 = vmin.f32 16.0, %v1533
    %v1535 = vmul.f32 %v1534, 2.1237322e-06
    %v1536 = vadd.f32 %v1535, 0.00028619796
    %v1537 = vmul.f32 %v1534, %v1536
    %v1538 = vadd.f32 %v1537, 0.0036580483
    %v1539 = vmul.f32 %v1534, %v1538
    %v1540 = vadd.f32 %v1539, 0.05243302
    %v1541 = vmul.f32 %v1534, %v1540
    %v1542 = vadd.f32 %v1541, 0.18741608
    %v1543 = vmul.f32 %v1534, %v1542
    %v1544 = vadd.f32 %v1543, 1.1283791
    %v1545 = vmul.f32 %v1532, %v1544
    %v1546 = vmul.f32 %v1534, 3.8918573e-05
    %v1547 = vadd.f32 %v1546, 0.001143296
    %v1548 = vmul.f32 %v1534, %v1547
    %v1549 = vadd.f32 %v1548, 0.014752088
    %v1550 = vmul.f32 %v1534, %v1549
    %v1551 = vadd.f32 %v1550, 0.112945676
    %v1552 = vmul.f32 %v1534, %v1551
    %v1553 = vadd.f32 %v1552, 0.4994258
    %v1554 = vmul.f32 %v1534, %v1553
    %v1555 = vadd.f32 %v1554, 1.0
    %v1556 = vrcp.pop %v1555
    %v1557 = vmul.f32 %v1555, %v1556
    %v1558 = vsub.f32 1.0, %v1557
    %v1559 = vmul.f32 %v1556, %v1558
    %v1560 = vadd.f32 %v1556, %v1559
    %vm1561 = vweird.f32 %v1555
    %vm1562 = vweird.f32 %v1556
    %vm1563 = vmor %vm1561, %vm1562
    %v1564 = vsel %vm1563, %v1556, %v1560
    %v1565 = vand.u32 2147483647, %v1555
    %vm1566 = vcmp.eq.f32.partialorder %v1565, 8.507059e+37
    %v1567 = vand.u32 %v1555, 2147483648
    %v1568 = vor.u32 1.1754944e-38, %v1567
    %v1569 = vsel %vm1566, %v1568, %v1564
    %v1570 = vmul.f32 %v1545, %v1569
    %v1571 = vmin.f32 %v1570, 1.0
    %v1572 = vmax.f32 %v1571, -1.0
    %v1573 = vadd.f32 %v1572, 1.0
    %v1574 = vmul.f32 %v1531, %v1573
    %1575 = vst.msk [vmem:[#allocation2 + $0x50] sm:$0xff] %vm22, %v1574
    %v1576 = vld [vmem:[%s75] ss:$2 sm:$0xf]
    %vm1577 = vcmask 257024
    %1578 = vst.msk [vmem:[#allocation3] sm:$0xf] %vm1577, %v1576
    %v1579 = vld [vmem:[%s87] ss:$2 sm:$0xf]
    %1581 = vrot.lane.b32.xlu0 %v1579, 32
    %v1582 = vpop.permute.xlu0 %1581
    %vm1584 = vcmask 519424
    %1585 = vst.msk [vmem:[#allocation3] sm:$0xf] %vm1584, %v1582
    %v1586 = vld [vmem:[%s116] ss:$2 sm:$0xf]
    %1588 = vrot.lane.b32.xlu0 %v1586, 64
    %v1589 = vpop.permute.xlu0 %1588
    %vm1591 = vcmask 781824
    %1592 = vst.msk [vmem:[#allocation3] sm:$0xf] %vm1591, %v1589
    %v1593 = vld [vmem:[%s145] ss:$2 sm:$0xf]
    %1594 = vst.msk [vmem:[#allocation3 + $0x8] sm:$0xf] %vm1577, %v1593
    %v1595 = vld [vmem:[%s157] ss:$2 sm:$0xf]
    %1597 = vrot.lane.b32.xlu0 %v1595, 32
    %v1598 = vpop.permute.xlu0 %1597
    %1600 = vst.msk [vmem:[#allocation3 + $0x8] sm:$0xf] %vm1584, %v1598
    %v1601 = vld [vmem:[%s185] ss:$2 sm:$0xf]
    %1603 = vrot.lane.b32.xlu0 %v1601, 64
    %v1604 = vpop.permute.xlu0 %1603
    %1606 = vst.msk [vmem:[#allocation3 + $0x8] sm:$0xf] %vm1591, %v1604
    %v1607 = vld [vmem:[#allocation3] sm:$0xff]
    %v1608 = vld [vmem:[#allocation3 + $0x8] sm:$0xff]
    %v1609 = vpack.c.bf16 %v1608, %v1607
    %s1610 = scalar_lea.vmem %s1, 144
    %v1611 = vld [vmem:[%s1610] sm:$0xf]
    %v1612 = vld [vmem:[%s1610 + $0x4] sm:$0xf]
    %v1613 = vld [vmem:[%s1610 + $0x8] sm:$0xf]
    %v1614 = vld [vmem:[%s1610 + $0xc] sm:$0xf]
    %v1615 = vld [vmem:[%s1610 + $0x10] sm:$0xf]
    %v1616 = vld [vmem:[%s1610 + $0x14] sm:$0xf]
    %v1617 = vld [vmem:[%s1610 + $0x18] sm:$0xf]
    %v1618 = vld [vmem:[%s1610 + $0x1c] sm:$0xf]
    %v1619 = vld [vmem:[%s1610 + $0x20] sm:$0xf]
    %v1620 = vld [vmem:[%s1610 + $0x24] sm:$0xf]
    %v1621 = vld [vmem:[%s1610 + $0x28] sm:$0xf]
    %v1622 = vld [vmem:[%s1610 + $0x2c] sm:$0xf]
    %v1635 = vunpack.c.l.b16 %v1611
    %v1636 = vunpack.c.l.b16 %v1612
    %v1637 = vunpack.c.l.b16 %v1613
    %v1638 = vunpack.c.l.b16 %v1614
    %v1639 = vunpack.c.l.b16 %v1615
    %v1640 = vunpack.c.l.b16 %v1616
    %v1641 = vunpack.c.l.b16 %v1617
    %v1642 = vunpack.c.l.b16 %v1618
    %v1643 = vunpack.c.l.b16 %v1619
    %v1644 = vunpack.c.l.b16 %v1620
    %v1645 = vunpack.c.l.b16 %v1621
    %v1646 = vunpack.c.l.b16 %v1622
    %v1647 = vpack.c.b16 %v1636, %v1635
    %v1648 = vpack.c.b16 %v1638, %v1637
    %v1649 = vpack.c.b16 %v1640, %v1639
    %v1650 = vpack.c.b16 %v1642, %v1641
    %v1651 = vpack.c.b16 %v1644, %v1643
    %v1652 = vpack.c.b16 %v1646, %v1645
    %v1660 = vsel %vm273, %v1609, 0
    %1662 = vmatpush.bf16.msra.mxu0 0
    %1663 = vmatpush.bf16.msra.mxu0 0
    %1664 = vmatpush.bf16.msra.mxu0 %v1652
    %1665 = vmatpush.bf16.msra.mxu0 %v1651
    %1666 = vmatpush.bf16.msra.mxu0 %v1650
    %1667 = vmatpush.bf16.msra.mxu0 %v1649
    %1668 = vmatpush.bf16.msra.mxu0 %v1648
    %1669 = vmatpush.bf16.msra.mxu0 %v1647
    %1670 = vmatmul.bf16.gmra.mxu0 %v1660
    %v1671 = vpop.f32.mrf.mxu0
    %v1672 = vadd.f32 0.0, %v1671
    %v1673 = vpop.f32.mrf.mxu0
    %v1674 = vadd.f32 0.0, %v1673
    %1675 = vdwg.mxu0
    %s1676 = scalar_lea.vmem %s2, 3
    %v1677 = vld [vmem:[%s1676] sm:$0x1]
    %s1678 = scalar_lea.vmem %s3, 3
    %v1679 = vld [vmem:[%s1678] sm:$0x1]
    %s1680 = scalar_lea.vmem %s4, 3
    %v1681 = vld [vmem:[%s1680] sm:$0x1]
    %v1683 = vperm.slane %v1677, 0
    %v1685 = vadd.f32 %v1672, %v1683
    %v1686 = vsel %vm1577, %v1685, 0.0
    %1687 = vadd.xlane.f32.xlu0 %v1686
    %v1688 = vpop.xlane.xlu0 %1687
    %v1689 = vrot.slane %v1688, 4
    %v1690 = vadd.f32 %v1688, %v1689
    %v1691 = vrot.slane %v1690, 2
    %v1692 = vadd.f32 %v1690, %v1691
    %v1693 = vrot.slane %v1692, 1
    %v1694 = vadd.f32 %v1692, %v1693
    %s1695 = vtos %v1694
    %s1696 = smul.f32 %s1695, 0.0078125
    %v1697 = vmul.f32 %v1685, %v1685
    %v1698 = vsel %vm1577, %v1697, 0.0
    %1699 = vadd.xlane.f32.xlu0 %v1698
    %v1700 = vpop.xlane.xlu0 %1699
    %v1701 = vrot.slane %v1700, 4
    %v1702 = vadd.f32 %v1700, %v1701
    %v1703 = vrot.slane %v1702, 2
    %v1704 = vadd.f32 %v1702, %v1703
    %v1705 = vrot.slane %v1704, 1
    %v1706 = vadd.f32 %v1704, %v1705
    %s1707 = vtos %v1706
    %s1708 = smul.f32 %s1707, 0.0078125
    %s1709 = smul.f32 %s1696, %s1696
    %s1710 = ssub.f32 %s1708, %s1709
    %s1711 = smax.f32 %s1710, 0.0
    %v1712 = vstv %s1696
    %v1713 = vsub.f32 %v1685, %v1712
    %s1714 = sadd.f32 %s1711, 1e-05
    %v1715 = vstv %s1714
    %v1716 = vrsqrt.pop %v1715
    %v1717 = vmul.f32 %v1716, %v1715
    %v1718 = vmul.f32 %v1717, %v1716
    %v1719 = vmul.f32 0.5, %v1718
    %v1720 = vsub.f32 1.5, %v1719
    %v1721 = vmul.f32 %v1716, %v1720
    %vm1722 = vweird.f32 %v1715
    %vm1723 = vweird.f32 %v1716
    %vm1724 = vmor %vm1722, %vm1723
    %v1725 = vsel %vm1724, %v1716, %v1721
    %s1726 = vtos %v1725
    %v1727 = vstv %s1726
    %v1728 = vmul.f32 %v1713, %v1727
    %v1730 = vperm.slane %v1679, 0
    %v1732 = vmul.f32 %v1728, %v1730
    %v1734 = vperm.slane %v1681, 0
    %v1736 = vadd.f32 %v1732, %v1734
    %v1737 = vmul.f32 %v1736, 0.5
    %v1738 = vmul.f32 %v1736, 0.70710677
    %v1739 = vmul.f32 %v1738, %v1738
    %v1740 = vmin.f32 16.0, %v1739
    %v1741 = vmul.f32 %v1740, 2.1237322e-06
    %v1742 = vadd.f32 %v1741, 0.00028619796
    %v1743 = vmul.f32 %v1740, %v1742
    %v1744 = vadd.f32 %v1743, 0.0036580483
    %v1745 = vmul.f32 %v1740, %v1744
    %v1746 = vadd.f32 %v1745, 0.05243302
    %v1747 = vmul.f32 %v1740, %v1746
    %v1748 = vadd.f32 %v1747, 0.18741608
    %v1749 = vmul.f32 %v1740, %v1748
    %v1750 = vadd.f32 %v1749, 1.1283791
    %v1751 = vmul.f32 %v1738, %v1750
    %v1752 = vmul.f32 %v1740, 3.8918573e-05
    %v1753 = vadd.f32 %v1752, 0.001143296
    %v1754 = vmul.f32 %v1740, %v1753
    %v1755 = vadd.f32 %v1754, 0.014752088
    %v1756 = vmul.f32 %v1740, %v1755
    %v1757 = vadd.f32 %v1756, 0.112945676
    %v1758 = vmul.f32 %v1740, %v1757
    %v1759 = vadd.f32 %v1758, 0.4994258
    %v1760 = vmul.f32 %v1740, %v1759
    %v1761 = vadd.f32 %v1760, 1.0
    %v1762 = vrcp.pop %v1761
    %v1763 = vmul.f32 %v1761, %v1762
    %v1764 = vsub.f32 1.0, %v1763
    %v1765 = vmul.f32 %v1762, %v1764
    %v1766 = vadd.f32 %v1762, %v1765
    %vm1767 = vweird.f32 %v1761
    %vm1768 = vweird.f32 %v1762
    %vm1769 = vmor %vm1767, %vm1768
    %v1770 = vsel %vm1769, %v1762, %v1766
    %v1771 = vand.u32 2147483647, %v1761
    %vm1772 = vcmp.eq.f32.partialorder %v1771, 8.507059e+37
    %v1773 = vand.u32 %v1761, 2147483648
    %v1774 = vor.u32 1.1754944e-38, %v1773
    %v1775 = vsel %vm1772, %v1774, %v1770
    %v1776 = vmul.f32 %v1751, %v1775
    %v1777 = vmin.f32 %v1776, 1.0
    %v1778 = vmax.f32 %v1777, -1.0
    %v1779 = vadd.f32 %v1778, 1.0
    %v1780 = vmul.f32 %v1737, %v1779
    %1781 = vst.msk [vmem:[#allocation4] sm:$0xf] %vm1577, %v1780
    %v1782 = vadd.f32 %v1674, %v1683
    %v1783 = vsel %vm1577, %v1782, 0.0
    %1784 = vadd.xlane.f32.xlu0 %v1783
    %v1785 = vpop.xlane.xlu0 %1784
    %v1786 = vrot.slane %v1785, 4
    %v1787 = vadd.f32 %v1785, %v1786
    %v1788 = vrot.slane %v1787, 2
    %v1789 = vadd.f32 %v1787, %v1788
    %v1790 = vrot.slane %v1789, 1
    %v1791 = vadd.f32 %v1789, %v1790
    %s1792 = vtos %v1791
    %s1793 = smul.f32 %s1792, 0.0078125
    %v1794 = vmul.f32 %v1782, %v1782
    %v1795 = vsel %vm1577, %v1794, 0.0
    %1796 = vadd.xlane.f32.xlu0 %v1795
    %v1797 = vpop.xlane.xlu0 %1796
    %v1798 = vrot.slane %v1797, 4
    %v1799 = vadd.f32 %v1797, %v1798
    %v1800 = vrot.slane %v1799, 2
    %v1801 = vadd.f32 %v1799, %v1800
    %v1802 = vrot.slane %v1801, 1
    %v1803 = vadd.f32 %v1801, %v1802
    %s1804 = vtos %v1803
    %s1805 = smul.f32 %s1804, 0.0078125
    %s1806 = smul.f32 %s1793, %s1793
    %s1807 = ssub.f32 %s1805, %s1806
    %s1808 = smax.f32 %s1807, 0.0
    %v1809 = vstv %s1793
    %v1810 = vsub.f32 %v1782, %v1809
    %s1811 = sadd.f32 %s1808, 1e-05
    %v1812 = vstv %s1811
    %v1813 = vrsqrt.pop %v1812
    %v1814 = vmul.f32 %v1813, %v1812
    %v1815 = vmul.f32 %v1814, %v1813
    %v1816 = vmul.f32 0.5, %v1815
    %v1817 = vsub.f32 1.5, %v1816
    %v1818 = vmul.f32 %v1813, %v1817
    %vm1819 = vweird.f32 %v1812
    %vm1820 = vweird.f32 %v1813
    %vm1821 = vmor %vm1819, %vm1820
    %v1822 = vsel %vm1821, %v1813, %v1818
    %s1823 = vtos %v1822
    %v1824 = vstv %s1823
    %v1825 = vmul.f32 %v1810, %v1824
    %v1826 = vmul.f32 %v1825, %v1730
    %v1827 = vadd.f32 %v1826, %v1734
    %v1828 = vmul.f32 %v1827, 0.5
    %v1829 = vmul.f32 %v1827, 0.70710677
    %v1830 = vmul.f32 %v1829, %v1829
    %v1831 = vmin.f32 16.0, %v1830
    %v1832 = vmul.f32 %v1831, 2.1237322e-06
    %v1833 = vadd.f32 %v1832, 0.00028619796
    %v1834 = vmul.f32 %v1831, %v1833
    %v1835 = vadd.f32 %v1834, 0.0036580483
    %v1836 = vmul.f32 %v1831, %v1835
    %v1837 = vadd.f32 %v1836, 0.05243302
    %v1838 = vmul.f32 %v1831, %v1837
    %v1839 = vadd.f32 %v1838, 0.18741608
    %v1840 = vmul.f32 %v1831, %v1839
    %v1841 = vadd.f32 %v1840, 1.1283791
    %v1842 = vmul.f32 %v1829, %v1841
    %v1843 = vmul.f32 %v1831, 3.8918573e-05
    %v1844 = vadd.f32 %v1843, 0.001143296
    %v1845 = vmul.f32 %v1831, %v1844
    %v1846 = vadd.f32 %v1845, 0.014752088
    %v1847 = vmul.f32 %v1831, %v1846
    %v1848 = vadd.f32 %v1847, 0.112945676
    %v1849 = vmul.f32 %v1831, %v1848
    %v1850 = vadd.f32 %v1849, 0.4994258
    %v1851 = vmul.f32 %v1831, %v1850
    %v1852 = vadd.f32 %v1851, 1.0
    %v1853 = vrcp.pop %v1852
    %v1854 = vmul.f32 %v1852, %v1853
    %v1855 = vsub.f32 1.0, %v1854
    %v1856 = vmul.f32 %v1853, %v1855
    %v1857 = vadd.f32 %v1853, %v1856
    %vm1858 = vweird.f32 %v1852
    %vm1859 = vweird.f32 %v1853
    %vm1860 = vmor %vm1858, %vm1859
    %v1861 = vsel %vm1860, %v1853, %v1857
    %v1862 = vand.u32 2147483647, %v1852
    %vm1863 = vcmp.eq.f32.partialorder %v1862, 8.507059e+37
    %v1864 = vand.u32 %v1852, 2147483648
    %v1865 = vor.u32 1.1754944e-38, %v1864
    %v1866 = vsel %vm1863, %v1865, %v1861
    %v1867 = vmul.f32 %v1842, %v1866
    %v1868 = vmin.f32 %v1867, 1.0
    %v1869 = vmax.f32 %v1868, -1.0
    %v1870 = vadd.f32 %v1869, 1.0
    %v1871 = vmul.f32 %v1828, %v1870
    %s1872 = scalar_lea.vmem [#allocation4], 4
    %1873 = vst.msk [vmem:[%s1872] sm:$0xf] %vm1577, %v1871
    // Predicated region
    $region22: #{conv_encoder_tueg_forward.1} parent=1 // pred_check
      _
    $region23: #{conv_encoder_tueg_forward.1} parent=1 // pred_check_branch
      %1875 = sbr.rel (0) target = $region25
    $region24: #{conv_encoder_tueg_forward.1} parent=1 // pred_region
      %1877 = vsyncadd [#allocation5], 0
      %s1878 = sshll.u32 [#allocation4], 4
      %s1879 = int_to_ptr.vmem [resolvable:$true] %s1878
      %s1880 = sshll.u32 %s5, 4
      %s1881 = int_to_ptr.hbm [resolvable:$true] %s1880
      %1886 = dma.vmem_to_hbm [thread:$0]  %s1879, 128, %s1881, [#allocation5], 64, 64, 4
    $region25: #{conv_encoder_tueg_forward.1} parent=1 // pred_fallthru
      _
    // Predicated region
    $region26: #{conv_encoder_tueg_forward.1} parent=1 // pred_check
      _
    $region27: #{conv_encoder_tueg_forward.1} parent=1 // pred_check_branch
      %1888 = sbr.rel (0) target = $region29
    $region28: #{conv_encoder_tueg_forward.1} parent=1 // pred_region
      %1890 = dma.done [#allocation5], 128
    $region29: #{conv_encoder_tueg_forward.1} parent=1 // pred_fallthru
      _
    %1891 = vsyncpa [#allocation5], 1

</llo_original>
